<compile_context>
chip_gen: v5e
topology: v5e:2x2
jax: 0.10.0
libtpu: 0.0.40
codegen_flags: <defaults>
</compile_context>

<pallas_src>
import functools
import math

import jax
import jax.numpy as jnp
import numpy as np
from jax.experimental import pallas as pl
from jax.experimental.pallas import tpu as pltpu


# ----------------------------------------------------------------------------
# Kernel 1: per-group BatchNorm statistics (training mode).
# Grid = (n_groups [parallel], n_inner [arbitrary]).  Each group accumulates
# (mean, M2) for its slice of rows directly in its VMEM-resident output block
# using Chan's parallel merge (numerically stable, exact for equal tiles).
# ----------------------------------------------------------------------------
def _bn_stats_kernel(x_ref, mean_ref, m2_ref, *, n_tile):
    i = pl.program_id(1)                              # inner reduction index

    @pl.when(i == 0)
    def _init():
        mean_ref[...] = jnp.zeros_like(mean_ref)
        m2_ref[...] = jnp.zeros_like(m2_ref)

    x = x_ref[...].astype(jnp.float32)                # (4, tp, C): f32 math
    col = jnp.sum(x, axis=0)                          # (tp, C)
    tile_mean = jnp.sum(col, axis=0, keepdims=True) / n_tile      # (1, C)
    d = x - tile_mean                                 # centered second moment
    tile_m2 = jnp.sum(jnp.sum(d * d, axis=0), axis=0, keepdims=True)

    # Chan's merge of (count, mean, M2) with the group accumulator.
    n_old = (i * n_tile).astype(jnp.float32)
    n_new = n_old + float(n_tile)
    delta = tile_mean - mean_ref[...]
    mean_ref[...] = mean_ref[...] + delta * (float(n_tile) / n_new)
    m2_ref[...] = (m2_ref[...] + tile_m2
                   + delta * delta * (n_old * float(n_tile) / n_new))


# ----------------------------------------------------------------------------
# Kernel 2: fused BN-apply + ReLU + 2x2 avg-pool + 1x1 conv (GEMM on the MXU).
# x block: (4 pool taps, tp pooled rows, Cin) bf16;  weight block: (Cin, Cout_pad) bf16.
# ----------------------------------------------------------------------------
def _bn_relu_pool_conv_kernel(x_ref, scale_ref, shift_ref, w_ref, o_ref):
    x = x_ref[...].astype(jnp.float32)                # (4, tp, C): f32 math
    z = jnp.maximum(x * scale_ref[...] + shift_ref[...], 0.0)     # BN + ReLU
    pooled = 0.25 * jnp.sum(z, axis=0)                # (tp, C): 2x2 avg pool
    acc = jnp.dot(pooled.astype(jnp.bfloat16), w_ref[...],
                  preferred_element_type=jnp.float32)              # MXU GEMM
    o_ref[...] = acc.astype(o_ref.dtype)              # lane-dense bf16 store


# ----------------------------------------------------------------------------
# Helpers
# ----------------------------------------------------------------------------
def _tpu_vmem_capacity_bytes():
    """Best-effort per-core VMEM capacity; conservative (v7x, 64 MiB) fallback."""
    try:
        info = pltpu.get_tpu_info()
        cap = getattr(info, "vmem_capacity_bytes", None)
        if cap:
            return int(cap)
    except Exception:
        pass
    return 64 * 1024 * 1024


def _pick_row_tile(p_out, c, cout_pad, budget_bytes, cap):
    """Largest row tile that divides p_out, is a multiple of 8, fits the VMEM
    budget (double-buffered bf16 x + bf16 out + resident weight) and <= cap."""
    bytes_per_row = 2 * (4 * c * 2) + 2 * (cout_pad * 2)   # x + out, x2 buffers
    fixed = 2 * (c * cout_pad * 2) + 4 * (c * 4)           # weight (+ scale/shift)
    tp_budget = (budget_bytes - fixed) // bytes_per_row
    target = max(8, min(cap, tp_budget))
    if p_out <= target:
        return p_out                                       # full extent is legal
    start = (target // 8) * 8
    for d in range(start, 7, -8):
        if p_out % d == 0:
            return d
    # TODO(synk): add a pad-and-mask path for awkward pooled-row counts.
    raise ValueError(
        f"No multiple-of-8 row tile <= {target} divides pooled rows = {p_out}; "
        "adjust row_tile_cap or pad the spatial dims.")


# ----------------------------------------------------------------------------
# Wrapper
# ----------------------------------------------------------------------------
def transition_forward(x_nchw, gamma, beta, conv_w, *, eps=1e-5,
                       row_tile_cap=2048, lane_pad=128):
    """Transition.forward.  x_nchw: (N, Cin, H, W); conv_w: (Cout, Cin, 1, 1)."""
    N, C, H, W = x_nchw.shape
    assert H % 2 == 0 and W % 2 == 0, "avg_pool2d(2) needs even spatial dims"
    Cout = conv_w.shape[0]
    Ho, Wo = H // 2, W // 2
    P_out = N * Ho * Wo                                    # pooled rows
    total_rows = N * H * W                                 # BN reduction size
    out_dtype = x_nchw.dtype

    # Generation-aware VMEM sizing.
    vmem_cap = _tpu_vmem_capacity_bytes()
    budget = int(vmem_cap * 0.40)                          # live double-buffered blocks
    vmem_limit = min(vmem_cap - (8 << 20), int(vmem_cap * 0.75))

    # Single bf16 layout pass: NCHW -> (2x2 pool taps, pooled rows, channels).
    xr = x_nchw.astype(jnp.bfloat16).reshape(N, C, Ho, 2, Wo, 2)
    xr = jnp.transpose(xr, (3, 5, 0, 2, 4, 1)).reshape(4, P_out, C)

    # 1x1 conv weight -> (Cin, Cout_pad), bf16, zero-padded to 128 lanes.
    Cout_pad = ((Cout + lane_pad - 1) // lane_pad) * lane_pad
    w = conv_w.reshape(Cout, C).T.astype(jnp.bfloat16)
    w = jnp.pad(w, ((0, 0), (0, Cout_pad - Cout)))

    tp = _pick_row_tile(P_out, C, Cout_pad, budget, row_tile_cap)
    grid_rows = P_out // tp
    n_tile = 4 * tp                                        # BN rows per grid step

    # Two-level stats reduction: outer "parallel" groups (sharded across TCs),
    # inner "arbitrary" Chan-merge carry.
    n_groups = 2 if (grid_rows >= 2 and grid_rows % 2 == 0) else 1
    n_inner = grid_rows // n_groups

    # Pass 1: per-group (mean, M2) partials.  Stats are replicated across the
    # 8 sublanes of each group's block so the block shape stays (8, C)-legal.
    mean_out, m2_out = pl.pallas_call(
        functools.partial(_bn_stats_kernel, n_tile=n_tile),
        out_shape=(jax.ShapeDtypeStruct((8 * n_groups, C), jnp.float32),
                   jax.ShapeDtypeStruct((8 * n_groups, C), jnp.float32)),
        grid=(n_groups, n_inner),
        in_specs=[pl.BlockSpec((4, tp, C),
                               lambda o, i: (0, o * n_inner + i, 0))],
        out_specs=(pl.BlockSpec((8, C), lambda o, i: (o, 0)),
                   pl.BlockSpec((8, C), lambda o, i: (o, 0))),
        compiler_params=pltpu.CompilerParams(
            dimension_semantics=("parallel", "arbitrary"),
            vmem_limit_bytes=vmem_limit),
    )(xr)

    # Tiny XLA-side cross-group merge + BN fold (C-sized, negligible).
    mean_parts = mean_out[0::8]                            # (n_groups, C)
    m2_parts = m2_out[0::8]                                # (n_groups, C)
    n_g = float(total_rows) / n_groups
    gmean = jnp.mean(mean_parts, axis=0, keepdims=True)    # (1, C)
    m2 = (jnp.sum(m2_parts, axis=0, keepdims=True)
          + n_g * jnp.sum((mean_parts - gmean) ** 2, axis=0, keepdims=True))
    var = m2 / float(total_rows)                           # biased (PyTorch BN)
    inv = jax.lax.rsqrt(var + eps)
    scale = gamma.reshape(1, C).astype(jnp.float32) * inv
    shift = beta.reshape(1, C).astype(jnp.float32) - gmean * scale

    # Pass 2: fused BN + ReLU + avg-pool + conv1x1, row-tiled & pipelined.
    out = pl.pallas_call(
        _bn_relu_pool_conv_kernel,
        out_shape=jax.ShapeDtypeStruct((P_out, Cout_pad), jnp.bfloat16),
        grid=(grid_rows,),
        in_specs=[pl.BlockSpec((4, tp, C), lambda i: (0, i, 0)),
                  pl.BlockSpec((1, C), lambda i: (0, 0)),
                  pl.BlockSpec((1, C), lambda i: (0, 0)),
                  pl.BlockSpec((C, Cout_pad), lambda i: (0, 0))],   # resident weight
        out_specs=pl.BlockSpec((tp, Cout_pad), lambda i: (i, 0)),
        compiler_params=pltpu.CompilerParams(
            dimension_semantics=("parallel",),             # shards across TCs
            vmem_limit_bytes=vmem_limit),
    )(xr, scale, shift, w)

    # Un-pad the lane padding and return NCHW (module's interface dtype).
    out = out[:, :Cout].reshape(N, Ho, Wo, Cout)
    return jnp.transpose(out, (0, 3, 1, 2)).astype(out_dtype)


# ----------------------------------------------------------------------------
# Pure-JAX reference (PyTorch semantics: training-mode BN, biased variance).
# ----------------------------------------------------------------------------
def _reference(x, gamma, beta, conv_w, eps=1e-5):
    mean = x.mean(axis=(0, 2, 3), keepdims=True)
    var = ((x - mean) ** 2).mean(axis=(0, 2, 3), keepdims=True)
    y = (x - mean) * jax.lax.rsqrt(var + eps)
    y = y * gamma.reshape(1, -1, 1, 1) + beta.reshape(1, -1, 1, 1)
    y = jnp.maximum(y, 0.0)
    w2 = conv_w.reshape(conv_w.shape[0], conv_w.shape[1])
    y = jnp.einsum("nchw,oc->nohw", y, w2)
    N, Co, H, W = y.shape
    return y.reshape(N, Co, H // 2, 2, W // 2, 2).mean(axis=(3, 5))


# ----------------------------------------------------------------------------
if __name__ == "__main__":
    key = jax.random.PRNGKey(0)
    k_x, k_w, k_g, k_b = jax.random.split(key, 4)

    # Small but representative Transition shapes.
    N, C_in, C_out, H, W = 4, 64, 32, 32, 32

    x = jax.random.normal(k_x, (N, C_in, H, W), jnp.float32)
    conv_w = jax.random.normal(k_w, (C_out, C_in, 1, 1), jnp.float32) \
        * math.sqrt(2.0 / C_in)
    gamma = 1.0 + 0.1 * jax.random.normal(k_g, (C_in,), jnp.float32)
    beta = 0.1 * jax.random.normal(k_b, (C_in,), jnp.float32)

    # Small row-tile cap so the test exercises the tiled grid, the two-level
    # parallel stats reduction and the in-kernel Chan merge.
    fwd = jax.jit(functools.partial(transition_forward, row_tile_cap=128))
    out = fwd(x, gamma, beta, conv_w)
    jax.block_until_ready(out)

    assert out.shape == (N, C_out, H // 2, W // 2)
    assert bool(jnp.all(jnp.isfinite(out)))

    ref = _reference(x, gamma, beta, conv_w)
    np.testing.assert_allclose(np.asarray(out), np.asarray(ref),
                               rtol=5e-2, atol=5e-2)  # bf16 staging/MXU tolerance

    print("KERNEL_OK")
</pallas_src>

<mosaic_0001>
module attributes {stable_mosaic.version = 11 : i64} {
  func.func @_bn_stats_kernel(%arg0: i32, %arg1: i32, %arg2: memref<4x128x64xbf16, #tpu.memory_space<vmem>>, %arg3: memref<8x64xf32, #tpu.memory_space<vmem>>, %arg4: memref<8x64xf32, #tpu.memory_space<vmem>>) attributes {dimension_semantics = [#tpu.dimension_semantics<parallel>, #tpu.dimension_semantics<arbitrary>], iteration_bounds = array<i64: 2, 4>, scalar_prefetch = 0 : i64, scratch_operands = 0 : i64, tpu.core_type = #tpu.core_type<tc>, window_params = [{transform_indices = @transform_0, window_bounds = array<i64: 4, 128, 64>}, {transform_indices = @transform_1, window_bounds = array<i64: 8, 64>}, {transform_indices = @transform_2, window_bounds = array<i64: 8, 64>}]} {
    %c0_i32 = arith.constant 0 : i32
    %0 = arith.cmpi eq, %arg1, %c0_i32 : i32
    %1 = arith.extui %0 : i1 to i32
    %c0_i32_0 = arith.constant 0 : i32
    %2 = arith.cmpi ne, %1, %c0_i32_0 : i32
    scf.if %2 {
      %cst_20 = arith.constant 0.000000e+00 : f32
      %39 = vector.broadcast %cst_20 : f32 to vector<8x64xf32>
      %c0_21 = arith.constant 0 : index
      %c0_22 = arith.constant 0 : index
      %40 = vector.load %arg3[%c0_21, %c0_22] : memref<8x64xf32, #tpu.memory_space<vmem>>, vector<8x64xf32>
      tpu.vector_store %arg3[%c0_21, %c0_22], %39 {strides = array<i32>} : memref<8x64xf32, #tpu.memory_space<vmem>>, vector<8x64xf32>,
      %cst_23 = arith.constant 0.000000e+00 : f32
      %41 = vector.broadcast %cst_23 : f32 to vector<8x64xf32>
      %c0_24 = arith.constant 0 : index
      %c0_25 = arith.constant 0 : index
      %42 = vector.load %arg4[%c0_24, %c0_25] : memref<8x64xf32, #tpu.memory_space<vmem>>, vector<8x64xf32>
      tpu.vector_store %arg4[%c0_24, %c0_25], %41 {strides = array<i32>} : memref<8x64xf32, #tpu.memory_space<vmem>>, vector<8x64xf32>,
    } else {
    }
    %c0 = arith.constant 0 : index
    %c0_1 = arith.constant 0 : index
    %c0_2 = arith.constant 0 : index
    %3 = vector.load %arg2[%c0, %c0_1, %c0_2] : memref<4x128x64xbf16, #tpu.memory_space<vmem>>, vector<4x128x64xbf16>
    %4 = arith.extf %3 : vector<4x128x64xbf16> to vector<4x128x64xf32>
    %cst = arith.constant dense<0.000000e+00> : vector<128x64xf32>
    %5 = vector.multi_reduction <add>, %4, %cst [0] : vector<4x128x64xf32> to vector<128x64xf32>
    %cst_3 = arith.constant dense<0.000000e+00> : vector<64xf32>
    %6 = vector.multi_reduction <add>, %5, %cst_3 [0] : vector<128x64xf32> to vector<64xf32>
    %7 = vector.shape_cast %6 : vector<64xf32> to vector<1x64xf32>
    %cst_4 = arith.constant 5.120000e+02 : f32
    %8 = vector.broadcast %cst_4 : f32 to vector<1x64xf32>
    %9 = arith.divf %7, %8 : vector<1x64xf32>
    %10 = vector.shape_cast %9 : vector<1x64xf32> to vector<1x1x64xf32>
    %11 = vector.broadcast %10 : vector<1x1x64xf32> to vector<4x128x64xf32>
    %12 = arith.subf %4, %11 : vector<4x128x64xf32>
    %13 = arith.mulf %12, %12 : vector<4x128x64xf32>
    %cst_5 = arith.constant dense<0.000000e+00> : vector<128x64xf32>
    %14 = vector.multi_reduction <add>, %13, %cst_5 [0] : vector<4x128x64xf32> to vector<128x64xf32>
    %cst_6 = arith.constant dense<0.000000e+00> : vector<64xf32>
    %15 = vector.multi_reduction <add>, %14, %cst_6 [0] : vector<128x64xf32> to vector<64xf32>
    %16 = vector.shape_cast %15 : vector<64xf32> to vector<1x64xf32>
    %c512_i32 = arith.constant 512 : i32
    %17 = arith.muli %arg1, %c512_i32 : i32
    %18 = arith.sitofp %17 : i32 to f32
    %cst_7 = arith.constant 5.120000e+02 : f32
    %19 = arith.addf %18, %cst_7 : f32
    %c0_8 = arith.constant 0 : index
    %c0_9 = arith.constant 0 : index
    %20 = vector.load %arg3[%c0_8, %c0_9] : memref<8x64xf32, #tpu.memory_space<vmem>>, vector<8x64xf32>
    %21 = vector.broadcast %9 : vector<1x64xf32> to vector<8x64xf32>
    %22 = arith.subf %21, %20 : vector<8x64xf32>
    %c0_10 = arith.constant 0 : index
    %c0_11 = arith.constant 0 : index
    %23 = vector.load %arg3[%c0_10, %c0_11] : memref<8x64xf32, #tpu.memory_space<vmem>>, vector<8x64xf32>
    %cst_12 = arith.constant 5.120000e+02 : f32
    %24 = arith.divf %cst_12, %19 : f32
    %25 = vector.broadcast %24 : f32 to vector<8x64xf32>
    %26 = arith.mulf %22, %25 : vector<8x64xf32>
    %27 = arith.addf %23, %26 : vector<8x64xf32>
    %c0_13 = arith.constant 0 : index
    %c0_14 = arith.constant 0 : index
    %28 = vector.load %arg3[%c0_13, %c0_14] : memref<8x64xf32, #tpu.memory_space<vmem>>, vector<8x64xf32>
    tpu.vector_store %arg3[%c0_13, %c0_14], %27 {strides = array<i32>} : memref<8x64xf32, #tpu.memory_space<vmem>>, vector<8x64xf32>,
    %c0_15 = arith.constant 0 : index
    %c0_16 = arith.constant 0 : index
    %29 = vector.load %arg4[%c0_15, %c0_16] : memref<8x64xf32, #tpu.memory_space<vmem>>, vector<8x64xf32>
    %30 = vector.broadcast %16 : vector<1x64xf32> to vector<8x64xf32>
    %31 = arith.addf %29, %30 : vector<8x64xf32>
    %32 = arith.mulf %22, %22 : vector<8x64xf32>
    %cst_17 = arith.constant 5.120000e+02 : f32
    %33 = arith.mulf %18, %cst_17 : f32
    %34 = arith.divf %33, %19 : f32
    %35 = vector.broadcast %34 : f32 to vector<8x64xf32>
    %36 = arith.mulf %32, %35 : vector<8x64xf32>
    %37 = arith.addf %31, %36 : vector<8x64xf32>
    %c0_18 = arith.constant 0 : index
    %c0_19 = arith.constant 0 : index
    %38 = vector.load %arg4[%c0_18, %c0_19] : memref<8x64xf32, #tpu.memory_space<vmem>>, vector<8x64xf32>
    tpu.vector_store %arg4[%c0_18, %c0_19], %37 {strides = array<i32>} : memref<8x64xf32, #tpu.memory_space<vmem>>, vector<8x64xf32>,
    return
  }
  func.func @transform_0(%arg0: i32, %arg1: i32) -> (i32, i32, i32) {
    %c4_i32 = arith.constant 4 : i32
    %0 = arith.muli %arg0, %c4_i32 : i32
    %1 = arith.addi %0, %arg1 : i32
    %c0_i32 = arith.constant 0 : i32
    %c0_i32_0 = arith.constant 0 : i32
    %c0_i32_1 = arith.constant 0 : i32
    return %c0_i32, %1, %c0_i32_0 : i32, i32, i32
  }
  func.func @transform_1(%arg0: i32, %arg1: i32) -> (i32, i32) {
    %c0_i32 = arith.constant 0 : i32
    %c0_i32_0 = arith.constant 0 : i32
    return %arg0, %c0_i32 : i32, i32
  }
  func.func @transform_2(%arg0: i32, %arg1: i32) -> (i32, i32) {
    %c0_i32 = arith.constant 0 : i32
    %c0_i32_0 = arith.constant 0 : i32
    return %arg0, %c0_i32 : i32, i32
  }
}

module attributes {stable_mosaic.version = 11 : i64} {
  func.func @_bn_relu_pool_conv_kernel(%arg0: i32, %arg1: memref<4x128x64xbf16, #tpu.memory_space<vmem>>, %arg2: memref<1x64xf32, #tpu.memory_space<vmem>>, %arg3: memref<1x64xf32, #tpu.memory_space<vmem>>, %arg4: memref<64x128xbf16, #tpu.memory_space<vmem>>, %arg5: memref<128x128xbf16, #tpu.memory_space<vmem>>) attributes {dimension_semantics = [#tpu.dimension_semantics<parallel>], iteration_bounds = array<i64: 8>, scalar_prefetch = 0 : i64, scratch_operands = 0 : i64, tpu.core_type = #tpu.core_type<tc>, window_params = [{transform_indices = @transform_0, window_bounds = array<i64: 4, 128, 64>}, {pipeline_mode = #tpu.pipeline_mode<synchronous>, transform_indices = @transform_1, window_bounds = array<i64: 1, 64>}, {pipeline_mode = #tpu.pipeline_mode<synchronous>, transform_indices = @transform_2, window_bounds = array<i64: 1, 64>}, {pipeline_mode = #tpu.pipeline_mode<synchronous>, transform_indices = @transform_3, window_bounds = array<i64: 64, 128>}, {transform_indices = @transform_4, window_bounds = array<i64: 128, 128>}]} {
    %c0 = arith.constant 0 : index
    %c0_0 = arith.constant 0 : index
    %c0_1 = arith.constant 0 : index
    %0 = vector.load %arg1[%c0, %c0_0, %c0_1] : memref<4x128x64xbf16, #tpu.memory_space<vmem>>, vector<4x128x64xbf16>
    %1 = arith.extf %0 : vector<4x128x64xbf16> to vector<4x128x64xf32>
    %c0_2 = arith.constant 0 : index
    %c0_3 = arith.constant 0 : index
    %2 = vector.load %arg2[%c0_2, %c0_3] : memref<1x64xf32, #tpu.memory_space<vmem>>, vector<1x64xf32>
    %3 = vector.shape_cast %2 : vector<1x64xf32> to vector<1x1x64xf32>
    %4 = vector.broadcast %3 : vector<1x1x64xf32> to vector<4x128x64xf32>
    %5 = arith.mulf %1, %4 : vector<4x128x64xf32>
    %c0_4 = arith.constant 0 : index
    %c0_5 = arith.constant 0 : index
    %6 = vector.load %arg3[%c0_4, %c0_5] : memref<1x64xf32, #tpu.memory_space<vmem>>, vector<1x64xf32>
    %7 = vector.shape_cast %6 : vector<1x64xf32> to vector<1x1x64xf32>
    %8 = vector.broadcast %7 : vector<1x1x64xf32> to vector<4x128x64xf32>
    %9 = arith.addf %5, %8 : vector<4x128x64xf32>
    %cst = arith.constant 0.000000e+00 : f32
    %10 = vector.broadcast %cst : f32 to vector<4x128x64xf32>
    %11 = arith.maximumf %9, %10 : vector<4x128x64xf32>
    %cst_6 = arith.constant dense<0.000000e+00> : vector<128x64xf32>
    %12 = vector.multi_reduction <add>, %11, %cst_6 [0] : vector<4x128x64xf32> to vector<128x64xf32>
    %cst_7 = arith.constant 2.500000e-01 : f32
    %13 = vector.broadcast %cst_7 : f32 to vector<128x64xf32>
    %14 = arith.mulf %13, %12 : vector<128x64xf32>
    %15 = arith.truncf %14 : vector<128x64xf32> to vector<128x64xbf16>
    %c0_8 = arith.constant 0 : index
    %c0_9 = arith.constant 0 : index
    %16 = vector.load %arg4[%c0_8, %c0_9] : memref<64x128xbf16, #tpu.memory_space<vmem>>, vector<64x128xbf16>
    %cst_10 = arith.constant dense<0.000000e+00> : vector<128x128xf32>
    %17 = tpu.matmul %15, %16, %cst_10 {dimension_numbers = #tpu.dot_dimension_numbers<[1], [0], [0], [1], [0, 0, 1, 1], [], []>} : vector<128x64xbf16>, vector<64x128xbf16>, vector<128x128xf32> -> vector<128x128xf32>
    %18 = arith.truncf %17 : vector<128x128xf32> to vector<128x128xbf16>
    %c0_11 = arith.constant 0 : index
    %c0_12 = arith.constant 0 : index
    %19 = vector.load %arg5[%c0_11, %c0_12] : memref<128x128xbf16, #tpu.memory_space<vmem>>, vector<128x128xbf16>
    tpu.vector_store %arg5[%c0_11, %c0_12], %18 {strides = array<i32>} : memref<128x128xbf16, #tpu.memory_space<vmem>>, vector<128x128xbf16>,
    return
  }
  func.func @transform_0(%arg0: i32) -> (i32, i32, i32) {
    %c0_i32 = arith.constant 0 : i32
    %c0_i32_0 = arith.constant 0 : i32
    %c0_i32_1 = arith.constant 0 : i32
    return %c0_i32, %arg0, %c0_i32_0 : i32, i32, i32
  }
  func.func @transform_1(%arg0: i32) -> (i32, i32) {
    %c0_i32 = arith.constant 0 : i32
    %c0_i32_0 = arith.constant 0 : i32
    %c0_i32_1 = arith.constant 0 : i32
    return %c0_i32, %c0_i32_0 : i32, i32
  }
  func.func @transform_2(%arg0: i32) -> (i32, i32) {
    %c0_i32 = arith.constant 0 : i32
    %c0_i32_0 = arith.constant 0 : i32
    %c0_i32_1 = arith.constant 0 : i32
    return %c0_i32, %c0_i32_0 : i32, i32
  }
  func.func @transform_3(%arg0: i32) -> (i32, i32) {
    %c0_i32 = arith.constant 0 : i32
    %c0_i32_0 = arith.constant 0 : i32
    %c0_i32_1 = arith.constant 0 : i32
    return %c0_i32, %c0_i32_0 : i32, i32
  }
  func.func @transform_4(%arg0: i32) -> (i32, i32) {
    %c0_i32 = arith.constant 0 : i32
    %c0_i32_0 = arith.constant 0 : i32
    return %arg0, %c0_i32 : i32, i32
  }
}

</mosaic_0001>

<llo_original>
// kernel: transition_forward.2
$region0: #{transition_forward.2}
  #allocation0 [shape = 'u32[]', space=smem, size = 0x4, offset = 0x4, fixed_abs, tag = 'smem constant byte address 0x4 - core index']
  #allocation1 [shape = 'u32[72,128]{1,0:T(1,128)}', space=vmem, size = 0x9000, scoped, tag = 'internal scratch']
  %s0 = inlined_call_operand.vmem [shape: bf16[4,1024,64], index: 0, kind: input, shape index: {}]
  %s1 = inlined_call_operand.vmem [shape: f32[16,64], index: 1, kind: output, shape index: {0}]
  %s2 = inlined_call_operand.vmem [shape: f32[16,64], index: 2, kind: output, shape index: {1}]
  %3 = xla_tuple %s1, %s2
  %s4 = sld [smem:[#allocation0]]
  $region90: #{transition_forward.2} parent=0
    _
  %s6 = ssub.s32 1, %s4
  %s7 = scalar_select 0, %s6, %s4
  $region1: #{transition_forward.2} parent=0
    #allocation2 [shape = 'u8[262144]{0}', space=vmem, size = 0x40000, scoped, tag = 'input window, operand 0']
    loop: start=0, step=1, limit=10
    $region2: #{transition_forward.2} parent=1 // loop_pre_header
      _
    $region3: #{transition_forward.2} parent=1 // loop_header
      %s9 = sphi 0, %s13
      %p10 = scmp.ge.s32.totalorder %s9, 10
      %s16 = sphi 0, %s28
      %s17 = sphi 0, %s24
      %s18 = sphi 0, %s16
      %s19 = sphi 0, %s17
      %s20 = sphi 0, %s18
      %s21 = sphi 0, %s19
      %s35 = sphi 0, %s37
      %s38 = sphi 0, %s35
      %s39 = sphi 0, %s38
      %s55 = sphi 0, %s39
      %s61 = sphi 0, %s63
      %s64 = sphi 0, %s61
      %s65 = sphi 0, %s64
      %s81 = sphi 0, %s65
      %s87 = sphi 0, %s89
      %s90 = sphi 0, %s87
      %s91 = sphi 0, %s90
      %s107 = sphi 0, %s91
    $region4: #{transition_forward.2} parent=1 // loop_header_branch
      %12 = sbr.rel (%p10) target = $region8
    $region5: #{transition_forward.2} parent=1 // loop_body
      %s14 = ssub.s32 %s9, 1
      %s15 = ssub.s32 %s9, 2
      %s22 = sadd.s32 1, %s17
      %p23 = scmp.ge.s32.totalorder %s22, 4
      %s24 = scalar_select %p23, 0, %s22
      %s25 = sadd.s32 1, %s16
      %s26 = scalar_select %p23, %s25, %s16
      %p27 = scmp.ge.s32.totalorder %s26, 2
      %s28 = scalar_select %p27, 0, %s26
      %s29 = smul.u32 %s16, 4
      %s30 = sadd.s32 %s29, %s17
      %s31 = smul.u32 %s28, 4
      %s32 = sadd.s32 %s31, %s24
      %s33 = ssub.s32 %s30, %s32
      %p34 = scmp.eq.s32.totalorder %s33, 0
      %s36 = sadd.s32 %s35, 1
      %s37 = scalar_select %p34, %s35, %s36
      %p40 = pneg %p34
      %p41 = scmp.eq.s32.totalorder %s9, 7
      %p42 = por %p40, %p41
      %p43 = scmp.ne.s32.totalorder %s35, %s38
      %p44 = scmp.eq.s32.totalorder %s9, 0
      %p45 = por %p43, %p44
      %p46 = scmp.ne.s32.totalorder %s35, %s38
      %p47 = scmp.eq.s32.totalorder %s14, 7
      %p48 = por %p46, %p47
      %p49 = scmp.ne.s32.totalorder %s38, %s39
      %p50 = scmp.eq.s32.totalorder %s14, 0
      %p51 = por %p49, %p50
      %p52 = scmp.ne.s32.totalorder %s38, %s39
      %p53 = scmp.eq.s32.totalorder %s15, 7
      %p54 = por %p52, %p53
      %p56 = scmp.ne.s32.totalorder %s39, %s55
      %p57 = scmp.eq.s32.totalorder %s15, 0
      %p58 = por %p56, %p57
      %s59 = ssub.s32 %s16, %s28
      %p60 = scmp.eq.s32.totalorder %s59, 0
      %s62 = sadd.s32 %s61, 1
      %s63 = scalar_select %p60, %s61, %s62
      %p66 = pneg %p60
      %p67 = scmp.eq.s32.totalorder %s9, 7
      %p68 = por %p66, %p67
      %p69 = scmp.ne.s32.totalorder %s61, %s64
      %p70 = scmp.eq.s32.totalorder %s9, 0
      %p71 = por %p69, %p70
      %p72 = scmp.ne.s32.totalorder %s61, %s64
      %p73 = scmp.eq.s32.totalorder %s14, 7
      %p74 = por %p72, %p73
      %p75 = scmp.ne.s32.totalorder %s64, %s65
      %p76 = scmp.eq.s32.totalorder %s14, 0
      %p77 = por %p75, %p76
      %p78 = scmp.ne.s32.totalorder %s64, %s65
      %p79 = scmp.eq.s32.totalorder %s15, 7
      %p80 = por %p78, %p79
      %p82 = scmp.ne.s32.totalorder %s65, %s81
      %p83 = scmp.eq.s32.totalorder %s15, 0
      %p84 = por %p82, %p83
      %s85 = ssub.s32 %s16, %s28
      %p86 = scmp.eq.s32.totalorder %s85, 0
      %s88 = sadd.s32 %s87, 1
      %s89 = scalar_select %p86, %s87, %s88
      %p92 = pneg %p86
      %p93 = scmp.eq.s32.totalorder %s9, 7
      %p94 = por %p92, %p93
      %p95 = scmp.ne.s32.totalorder %s87, %s90
      %p96 = scmp.eq.s32.totalorder %s9, 0
      %p97 = por %p95, %p96
      %p98 = scmp.ne.s32.totalorder %s87, %s90
      %p99 = scmp.eq.s32.totalorder %s14, 7
      %p100 = por %p98, %p99
      %p101 = scmp.ne.s32.totalorder %s90, %s91
      %p102 = scmp.eq.s32.totalorder %s14, 0
      %p103 = por %p101, %p102
      %p104 = scmp.ne.s32.totalorder %s90, %s91
      %p105 = scmp.eq.s32.totalorder %s15, 7
      %p106 = por %p104, %p105
      %p108 = scmp.ne.s32.totalorder %s91, %s107
      %p109 = scmp.eq.s32.totalorder %s15, 0
      %p110 = por %p108, %p109
      %p111 = scmp.le.s32.totalorder 1, %s9
      %p112 = scmp.lt.s32.totalorder %s9, 9
      %p113 = pnand %p111, %p112
      %p114 = pneg %p113
      // Predicated region
      $region9: #{transition_forward.2} parent=5 // pred_check
        _
      $region10: #{transition_forward.2} parent=5 // pred_check_branch
        %116 = sbr.rel (%p113) target = $region12
      $region11: #{transition_forward.2} parent=5 // pred_region
        %s117 = ssub.s32 %s9, 1
      $region12: #{transition_forward.2} parent=5 // pred_fallthru
        _
      %p118 = scmp.lt.s32.totalorder %s9, 8
      // Predicated region
      $region13: #{transition_forward.2} parent=5 // pred_check
        %p119 = pneg %p118
      $region14: #{transition_forward.2} parent=5 // pred_check_branch
        %121 = sbr.rel (%p119) target = $region16
      $region15: #{transition_forward.2} parent=5 // pred_region
        // Predicated region
        $region17: #{transition_forward.2} parent=15 // pred_check
          %p122 = pneg %p45
        $region18: #{transition_forward.2} parent=15 // pred_check_branch
          %124 = sbr.rel (%p122) target = $region20
        $region19: #{transition_forward.2} parent=15 // pred_region
          %s125 = sand.u32 %s35, 1
          %s126 = sand.u32 %s35, 1
          %s127 = smul.addr %s126, 256
          %s128 = scalar_lea.vmem [#allocation2], %s127
          %s129 = smul.u32 %s16, 4
          %s130 = sadd.s32 %s129, %s17
          %s131 = smul.u32 16, %s130
          %s132 = smul.addr %s131, 4
          %s133 = scalar_lea.vmem %s0, %s132
          // Predicated region
          $region21: #{transition_forward.2} parent=19 // pred_check
            _
          $region22: #{transition_forward.2} parent=19 // pred_check_branch
            %135 = sbr.rel (0) target = $region24
          $region23: #{transition_forward.2} parent=19 // pred_region
            // Predicated region
            $region25: #{transition_forward.2} parent=23 // pred_check
              _
            $region26: #{transition_forward.2} parent=23 // pred_check_branch
              %137 = sbr.rel target = $region28
            $region27: #{transition_forward.2} parent=23 // pred_region
              // Predicated region
              $region40: #{transition_forward.2} parent=27 // pred_check
                _
              $region41: #{transition_forward.2} parent=27 // pred_check_branch
                %279 = sbr.rel (0) target = $region43
              $region42: #{transition_forward.2} parent=27 // pred_region
                loop: start=0, step=1, limit=1
                $region44: #{transition_forward.2} parent=42 // loop_pre_header
                  _
                $region45: #{transition_forward.2} parent=42 // loop_header
                  %s281 = sphi 0, %s285
                  %p282 = scmp.ge.s32.totalorder %s281, 1
                  %s286 = sphi %s133, %s133
                  %s287 = sphi %s128, %s128
                $region46: #{transition_forward.2} parent=42 // loop_header_branch
                  %284 = sbr.rel (%p282) target = $region50
                $region47: #{transition_forward.2} parent=42 // loop_body
                  _
                $region48: #{transition_forward.2} parent=42 // loop_footer
                  %s285 = sadd.s32 1, %s281
                $region49: #{transition_forward.2} parent=42 // loop_footer_branch
                  %280 = sbr.rel target = $region45
                $region50: #{transition_forward.2} parent=42 // loop_exit
                  _
                %s289 = ssub.s32 16, 1
                loop: start=0, step=1, limit=1
                $region51: #{transition_forward.2} parent=42 // loop_pre_header
                  _
                $region52: #{transition_forward.2} parent=42 // loop_header
                  %s291 = sphi 0, %s295
                  %p292 = scmp.ge.s32.totalorder %s291, 1
                  %s296 = sphi %s133, %s133
                  %s297 = sphi %s128, %s128
                $region53: #{transition_forward.2} parent=42 // loop_header_branch
                  %294 = sbr.rel (%p292) target = $region57
                $region54: #{transition_forward.2} parent=42 // loop_body
                  %v298 = vld [vmem:[%s296] sm:%s289]
                  %299 = vst [vmem:[%s297] sm:%s289] %v298
                  %v300 = vld [vmem:[%s296 + $0x4] sm:%s289]
                  %301 = vst [vmem:[%s297 + $0x4] sm:%s289] %v300
                  %v302 = vld [vmem:[%s296 + $0x8] sm:%s289]
                  %303 = vst [vmem:[%s297 + $0x8] sm:%s289] %v302
                  %v304 = vld [vmem:[%s296 + $0xc] sm:%s289]
                  %305 = vst [vmem:[%s297 + $0xc] sm:%s289] %v304
                  %v306 = vld [vmem:[%s296 + $0x10] sm:%s289]
                  %307 = vst [vmem:[%s297 + $0x10] sm:%s289] %v306
                  %v308 = vld [vmem:[%s296 + $0x14] sm:%s289]
                  %309 = vst [vmem:[%s297 + $0x14] sm:%s289] %v308
                  %v310 = vld [vmem:[%s296 + $0x18] sm:%s289]
                  %311 = vst [vmem:[%s297 + $0x18] sm:%s289] %v310
                  %v312 = vld [vmem:[%s296 + $0x1c] sm:%s289]
                  %313 = vst [vmem:[%s297 + $0x1c] sm:%s289] %v312
                  %v314 = vld [vmem:[%s296 + $0x20] sm:%s289]
                  %315 = vst [vmem:[%s297 + $0x20] sm:%s289] %v314
                  %v316 = vld [vmem:[%s296 + $0x24] sm:%s289]
                  %317 = vst [vmem:[%s297 + $0x24] sm:%s289] %v316
                  %v318 = vld [vmem:[%s296 + $0x28] sm:%s289]
                  %319 = vst [vmem:[%s297 + $0x28] sm:%s289] %v318
                  %v320 = vld [vmem:[%s296 + $0x2c] sm:%s289]
                  %321 = vst [vmem:[%s297 + $0x2c] sm:%s289] %v320
                  %v322 = vld [vmem:[%s296 + $0x30] sm:%s289]
                  %323 = vst [vmem:[%s297 + $0x30] sm:%s289] %v322
                  %v324 = vld [vmem:[%s296 + $0x34] sm:%s289]
                  %325 = vst [vmem:[%s297 + $0x34] sm:%s289] %v324
                  %v326 = vld [vmem:[%s296 + $0x38] sm:%s289]
                  %327 = vst [vmem:[%s297 + $0x38] sm:%s289] %v326
                  %v328 = vld [vmem:[%s296 + $0x3c] sm:%s289]
                  %329 = vst [vmem:[%s297 + $0x3c] sm:%s289] %v328
                  %v330 = vld [vmem:[%s296 + $0x200] sm:%s289]
                  %331 = vst [vmem:[%s297 + $0x40] sm:%s289] %v330
                  %v332 = vld [vmem:[%s296 + $0x204] sm:%s289]
                  %333 = vst [vmem:[%s297 + $0x44] sm:%s289] %v332
                  %v334 = vld [vmem:[%s296 + $0x208] sm:%s289]
                  %335 = vst [vmem:[%s297 + $0x48] sm:%s289] %v334
                  %v336 = vld [vmem:[%s296 + $0x20c] sm:%s289]
                  %337 = vst [vmem:[%s297 + $0x4c] sm:%s289] %v336
                  %v338 = vld [vmem:[%s296 + $0x210] sm:%s289]
                  %339 = vst [vmem:[%s297 + $0x50] sm:%s289] %v338
                  %v340 = vld [vmem:[%s296 + $0x214] sm:%s289]
                  %341 = vst [vmem:[%s297 + $0x54] sm:%s289] %v340
                  %v342 = vld [vmem:[%s296 + $0x218] sm:%s289]
                  %343 = vst [vmem:[%s297 + $0x58] sm:%s289] %v342
                  %v344 = vld [vmem:[%s296 + $0x21c] sm:%s289]
                  %345 = vst [vmem:[%s297 + $0x5c] sm:%s289] %v344
                  %v346 = vld [vmem:[%s296 + $0x220] sm:%s289]
                  %347 = vst [vmem:[%s297 + $0x60] sm:%s289] %v346
                  %v348 = vld [vmem:[%s296 + $0x224] sm:%s289]
                  %349 = vst [vmem:[%s297 + $0x64] sm:%s289] %v348
                  %v350 = vld [vmem:[%s296 + $0x228] sm:%s289]
                  %351 = vst [vmem:[%s297 + $0x68] sm:%s289] %v350
                  %v352 = vld [vmem:[%s296 + $0x22c] sm:%s289]
                  %353 = vst [vmem:[%s297 + $0x6c] sm:%s289] %v352
                  %v354 = vld [vmem:[%s296 + $0x230] sm:%s289]
                  %355 = vst [vmem:[%s297 + $0x70] sm:%s289] %v354
                  %v356 = vld [vmem:[%s296 + $0x234] sm:%s289]
                  %357 = vst [vmem:[%s297 + $0x74] sm:%s289] %v356
                  %v358 = vld [vmem:[%s296 + $0x238] sm:%s289]
                  %359 = vst [vmem:[%s297 + $0x78] sm:%s289] %v358
                  %v360 = vld [vmem:[%s296 + $0x23c] sm:%s289]
                  %361 = vst [vmem:[%s297 + $0x7c] sm:%s289] %v360
                  %v362 = vld [vmem:[%s296 + $0x400] sm:%s289]
                  %363 = vst [vmem:[%s297 + $0x80] sm:%s289] %v362
                  %v364 = vld [vmem:[%s296 + $0x404] sm:%s289]
                  %365 = vst [vmem:[%s297 + $0x84] sm:%s289] %v364
                  %v366 = vld [vmem:[%s296 + $0x408] sm:%s289]
                  %367 = vst [vmem:[%s297 + $0x88] sm:%s289] %v366
                  %v368 = vld [vmem:[%s296 + $0x40c] sm:%s289]
                  %369 = vst [vmem:[%s297 + $0x8c] sm:%s289] %v368
                  %v370 = vld [vmem:[%s296 + $0x410] sm:%s289]
                  %371 = vst [vmem:[%s297 + $0x90] sm:%s289] %v370
                  %v372 = vld [vmem:[%s296 + $0x414] sm:%s289]
                  %373 = vst [vmem:[%s297 + $0x94] sm:%s289] %v372
                  %v374 = vld [vmem:[%s296 + $0x418] sm:%s289]
                  %375 = vst [vmem:[%s297 + $0x98] sm:%s289] %v374
                  %v376 = vld [vmem:[%s296 + $0x41c] sm:%s289]
                  %377 = vst [vmem:[%s297 + $0x9c] sm:%s289] %v376
                  %v378 = vld [vmem:[%s296 + $0x420] sm:%s289]
                  %379 = vst [vmem:[%s297 + $0xa0] sm:%s289] %v378
                  %v380 = vld [vmem:[%s296 + $0x424] sm:%s289]
                  %381 = vst [vmem:[%s297 + $0xa4] sm:%s289] %v380
                  %v382 = vld [vmem:[%s296 + $0x428] sm:%s289]
                  %383 = vst [vmem:[%s297 + $0xa8] sm:%s289] %v382
                  %v384 = vld [vmem:[%s296 + $0x42c] sm:%s289]
                  %385 = vst [vmem:[%s297 + $0xac] sm:%s289] %v384
                  %v386 = vld [vmem:[%s296 + $0x430] sm:%s289]
                  %387 = vst [vmem:[%s297 + $0xb0] sm:%s289] %v386
                  %v388 = vld [vmem:[%s296 + $0x434] sm:%s289]
                  %389 = vst [vmem:[%s297 + $0xb4] sm:%s289] %v388
                  %v390 = vld [vmem:[%s296 + $0x438] sm:%s289]
                  %391 = vst [vmem:[%s297 + $0xb8] sm:%s289] %v390
                  %v392 = vld [vmem:[%s296 + $0x43c] sm:%s289]
                  %393 = vst [vmem:[%s297 + $0xbc] sm:%s289] %v392
                  %v394 = vld [vmem:[%s296 + $0x600] sm:%s289]
                  %395 = vst [vmem:[%s297 + $0xc0] sm:%s289] %v394
                  %v396 = vld [vmem:[%s296 + $0x604] sm:%s289]
                  %397 = vst [vmem:[%s297 + $0xc4] sm:%s289] %v396
                  %v398 = vld [vmem:[%s296 + $0x608] sm:%s289]
                  %399 = vst [vmem:[%s297 + $0xc8] sm:%s289] %v398
                  %v400 = vld [vmem:[%s296 + $0x60c] sm:%s289]
                  %401 = vst [vmem:[%s297 + $0xcc] sm:%s289] %v400
                  %v402 = vld [vmem:[%s296 + $0x610] sm:%s289]
                  %403 = vst [vmem:[%s297 + $0xd0] sm:%s289] %v402
                  %v404 = vld [vmem:[%s296 + $0x614] sm:%s289]
                  %405 = vst [vmem:[%s297 + $0xd4] sm:%s289] %v404
                  %v406 = vld [vmem:[%s296 + $0x618] sm:%s289]
                  %407 = vst [vmem:[%s297 + $0xd8] sm:%s289] %v406
                  %v408 = vld [vmem:[%s296 + $0x61c] sm:%s289]
                  %409 = vst [vmem:[%s297 + $0xdc] sm:%s289] %v408
                  %v410 = vld [vmem:[%s296 + $0x620] sm:%s289]
                  %411 = vst [vmem:[%s297 + $0xe0] sm:%s289] %v410
                  %v412 = vld [vmem:[%s296 + $0x624] sm:%s289]
                  %413 = vst [vmem:[%s297 + $0xe4] sm:%s289] %v412
                  %v414 = vld [vmem:[%s296 + $0x628] sm:%s289]
                  %415 = vst [vmem:[%s297 + $0xe8] sm:%s289] %v414
                  %v416 = vld [vmem:[%s296 + $0x62c] sm:%s289]
                  %417 = vst [vmem:[%s297 + $0xec] sm:%s289] %v416
                  %v418 = vld [vmem:[%s296 + $0x630] sm:%s289]
                  %419 = vst [vmem:[%s297 + $0xf0] sm:%s289] %v418
                  %v420 = vld [vmem:[%s296 + $0x634] sm:%s289]
                  %421 = vst [vmem:[%s297 + $0xf4] sm:%s289] %v420
                  %v422 = vld [vmem:[%s296 + $0x638] sm:%s289]
                  %423 = vst [vmem:[%s297 + $0xf8] sm:%s289] %v422
                  %v424 = vld [vmem:[%s296 + $0x63c] sm:%s289]
                  %425 = vst [vmem:[%s297 + $0xfc] sm:%s289] %v424
                $region55: #{transition_forward.2} parent=42 // loop_footer
                  %s295 = sadd.s32 1, %s291
                $region56: #{transition_forward.2} parent=42 // loop_footer_branch
                  %290 = sbr.rel target = $region52
                $region57: #{transition_forward.2} parent=42 // loop_exit
                  _
              $region43: #{transition_forward.2} parent=27 // pred_fallthru
                _
            $region28: #{transition_forward.2} parent=23 // pred_fallthru
              _
            // Predicated region
            $region29: #{transition_forward.2} parent=23 // pred_check
              _
            $region30: #{transition_forward.2} parent=23 // pred_check_branch
              %139 = sbr.rel (0) target = $region32
            $region31: #{transition_forward.2} parent=23 // pred_region
              %s141 = ssub.s32 16, 1
              loop: start=0, step=1, limit=1
              $region33: #{transition_forward.2} parent=31 // loop_pre_header
                _
              $region34: #{transition_forward.2} parent=31 // loop_header
                %s143 = sphi 0, %s147
                %p144 = scmp.ge.s32.totalorder %s143, 1
                %s148 = sphi %s133, %s133
                %s149 = sphi %s128, %s128
              $region35: #{transition_forward.2} parent=31 // loop_header_branch
                %146 = sbr.rel (%p144) target = $region39
              $region36: #{transition_forward.2} parent=31 // loop_body
                %v150 = vld [vmem:[%s148] sm:%s141]
                %151 = vst [vmem:[%s149] sm:%s141] %v150
                %v152 = vld [vmem:[%s148 + $0x4] sm:%s141]
                %153 = vst [vmem:[%s149 + $0x4] sm:%s141] %v152
                %v154 = vld [vmem:[%s148 + $0x8] sm:%s141]
                %155 = vst [vmem:[%s149 + $0x8] sm:%s141] %v154
                %v156 = vld [vmem:[%s148 + $0xc] sm:%s141]
                %157 = vst [vmem:[%s149 + $0xc] sm:%s141] %v156
                %v158 = vld [vmem:[%s148 + $0x10] sm:%s141]
                %159 = vst [vmem:[%s149 + $0x10] sm:%s141] %v158
                %v160 = vld [vmem:[%s148 + $0x14] sm:%s141]
                %161 = vst [vmem:[%s149 + $0x14] sm:%s141] %v160
                %v162 = vld [vmem:[%s148 + $0x18] sm:%s141]
                %163 = vst [vmem:[%s149 + $0x18] sm:%s141] %v162
                %v164 = vld [vmem:[%s148 + $0x1c] sm:%s141]
                %165 = vst [vmem:[%s149 + $0x1c] sm:%s141] %v164
                %v166 = vld [vmem:[%s148 + $0x20] sm:%s141]
                %167 = vst [vmem:[%s149 + $0x20] sm:%s141] %v166
                %v168 = vld [vmem:[%s148 + $0x24] sm:%s141]
                %169 = vst [vmem:[%s149 + $0x24] sm:%s141] %v168
                %v170 = vld [vmem:[%s148 + $0x28] sm:%s141]
                %171 = vst [vmem:[%s149 + $0x28] sm:%s141] %v170
                %v172 = vld [vmem:[%s148 + $0x2c] sm:%s141]
                %173 = vst [vmem:[%s149 + $0x2c] sm:%s141] %v172
                %v174 = vld [vmem:[%s148 + $0x30] sm:%s141]
                %175 = vst [vmem:[%s149 + $0x30] sm:%s141] %v174
                %v176 = vld [vmem:[%s148 + $0x34] sm:%s141]
                %177 = vst [vmem:[%s149 + $0x34] sm:%s141] %v176
                %v178 = vld [vmem:[%s148 + $0x38] sm:%s141]
                %179 = vst [vmem:[%s149 + $0x38] sm:%s141] %v178
                %v180 = vld [vmem:[%s148 + $0x3c] sm:%s141]
                %181 = vst [vmem:[%s149 + $0x3c] sm:%s141] %v180
                %v182 = vld [vmem:[%s148 + $0x200] sm:%s141]
                %183 = vst [vmem:[%s149 + $0x40] sm:%s141] %v182
                %v184 = vld [vmem:[%s148 + $0x204] sm:%s141]
                %185 = vst [vmem:[%s149 + $0x44] sm:%s141] %v184
                %v186 = vld [vmem:[%s148 + $0x208] sm:%s141]
                %187 = vst [vmem:[%s149 + $0x48] sm:%s141] %v186
                %v188 = vld [vmem:[%s148 + $0x20c] sm:%s141]
                %189 = vst [vmem:[%s149 + $0x4c] sm:%s141] %v188
                %v190 = vld [vmem:[%s148 + $0x210] sm:%s141]
                %191 = vst [vmem:[%s149 + $0x50] sm:%s141] %v190
                %v192 = vld [vmem:[%s148 + $0x214] sm:%s141]
                %193 = vst [vmem:[%s149 + $0x54] sm:%s141] %v192
                %v194 = vld [vmem:[%s148 + $0x218] sm:%s141]
                %195 = vst [vmem:[%s149 + $0x58] sm:%s141] %v194
                %v196 = vld [vmem:[%s148 + $0x21c] sm:%s141]
                %197 = vst [vmem:[%s149 + $0x5c] sm:%s141] %v196
                %v198 = vld [vmem:[%s148 + $0x220] sm:%s141]
                %199 = vst [vmem:[%s149 + $0x60] sm:%s141] %v198
                %v200 = vld [vmem:[%s148 + $0x224] sm:%s141]
                %201 = vst [vmem:[%s149 + $0x64] sm:%s141] %v200
                %v202 = vld [vmem:[%s148 + $0x228] sm:%s141]
                %203 = vst [vmem:[%s149 + $0x68] sm:%s141] %v202
                %v204 = vld [vmem:[%s148 + $0x22c] sm:%s141]
                %205 = vst [vmem:[%s149 + $0x6c] sm:%s141] %v204
                %v206 = vld [vmem:[%s148 + $0x230] sm:%s141]
                %207 = vst [vmem:[%s149 + $0x70] sm:%s141] %v206
                %v208 = vld [vmem:[%s148 + $0x234] sm:%s141]
                %209 = vst [vmem:[%s149 + $0x74] sm:%s141] %v208
                %v210 = vld [vmem:[%s148 + $0x238] sm:%s141]
                %211 = vst [vmem:[%s149 + $0x78] sm:%s141] %v210
                %v212 = vld [vmem:[%s148 + $0x23c] sm:%s141]
                %213 = vst [vmem:[%s149 + $0x7c] sm:%s141] %v212
                %v214 = vld [vmem:[%s148 + $0x400] sm:%s141]
                %215 = vst [vmem:[%s149 + $0x80] sm:%s141] %v214
                %v216 = vld [vmem:[%s148 + $0x404] sm:%s141]
                %217 = vst [vmem:[%s149 + $0x84] sm:%s141] %v216
                %v218 = vld [vmem:[%s148 + $0x408] sm:%s141]
                %219 = vst [vmem:[%s149 + $0x88] sm:%s141] %v218
                %v220 = vld [vmem:[%s148 + $0x40c] sm:%s141]
                %221 = vst [vmem:[%s149 + $0x8c] sm:%s141] %v220
                %v222 = vld [vmem:[%s148 + $0x410] sm:%s141]
                %223 = vst [vmem:[%s149 + $0x90] sm:%s141] %v222
                %v224 = vld [vmem:[%s148 + $0x414] sm:%s141]
                %225 = vst [vmem:[%s149 + $0x94] sm:%s141] %v224
                %v226 = vld [vmem:[%s148 + $0x418] sm:%s141]
                %227 = vst [vmem:[%s149 + $0x98] sm:%s141] %v226
                %v228 = vld [vmem:[%s148 + $0x41c] sm:%s141]
                %229 = vst [vmem:[%s149 + $0x9c] sm:%s141] %v228
                %v230 = vld [vmem:[%s148 + $0x420] sm:%s141]
                %231 = vst [vmem:[%s149 + $0xa0] sm:%s141] %v230
                %v232 = vld [vmem:[%s148 + $0x424] sm:%s141]
                %233 = vst [vmem:[%s149 + $0xa4] sm:%s141] %v232
                %v234 = vld [vmem:[%s148 + $0x428] sm:%s141]
                %235 = vst [vmem:[%s149 + $0xa8] sm:%s141] %v234
                %v236 = vld [vmem:[%s148 + $0x42c] sm:%s141]
                %237 = vst [vmem:[%s149 + $0xac] sm:%s141] %v236
                %v238 = vld [vmem:[%s148 + $0x430] sm:%s141]
                %239 = vst [vmem:[%s149 + $0xb0] sm:%s141] %v238
                %v240 = vld [vmem:[%s148 + $0x434] sm:%s141]
                %241 = vst [vmem:[%s149 + $0xb4] sm:%s141] %v240
                %v242 = vld [vmem:[%s148 + $0x438] sm:%s141]
                %243 = vst [vmem:[%s149 + $0xb8] sm:%s141] %v242
                %v244 = vld [vmem:[%s148 + $0x43c] sm:%s141]
                %245 = vst [vmem:[%s149 + $0xbc] sm:%s141] %v244
                %v246 = vld [vmem:[%s148 + $0x600] sm:%s141]
                %247 = vst [vmem:[%s149 + $0xc0] sm:%s141] %v246
                %v248 = vld [vmem:[%s148 + $0x604] sm:%s141]
                %249 = vst [vmem:[%s149 + $0xc4] sm:%s141] %v248
                %v250 = vld [vmem:[%s148 + $0x608] sm:%s141]
                %251 = vst [vmem:[%s149 + $0xc8] sm:%s141] %v250
                %v252 = vld [vmem:[%s148 + $0x60c] sm:%s141]
                %253 = vst [vmem:[%s149 + $0xcc] sm:%s141] %v252
                %v254 = vld [vmem:[%s148 + $0x610] sm:%s141]
                %255 = vst [vmem:[%s149 + $0xd0] sm:%s141] %v254
                %v256 = vld [vmem:[%s148 + $0x614] sm:%s141]
                %257 = vst [vmem:[%s149 + $0xd4] sm:%s141] %v256
                %v258 = vld [vmem:[%s148 + $0x618] sm:%s141]
                %259 = vst [vmem:[%s149 + $0xd8] sm:%s141] %v258
                %v260 = vld [vmem:[%s148 + $0x61c] sm:%s141]
                %261 = vst [vmem:[%s149 + $0xdc] sm:%s141] %v260
                %v262 = vld [vmem:[%s148 + $0x620] sm:%s141]
                %263 = vst [vmem:[%s149 + $0xe0] sm:%s141] %v262
                %v264 = vld [vmem:[%s148 + $0x624] sm:%s141]
                %265 = vst [vmem:[%s149 + $0xe4] sm:%s141] %v264
                %v266 = vld [vmem:[%s148 + $0x628] sm:%s141]
                %267 = vst [vmem:[%s149 + $0xe8] sm:%s141] %v266
                %v268 = vld [vmem:[%s148 + $0x62c] sm:%s141]
                %269 = vst [vmem:[%s149 + $0xec] sm:%s141] %v268
                %v270 = vld [vmem:[%s148 + $0x630] sm:%s141]
                %271 = vst [vmem:[%s149 + $0xf0] sm:%s141] %v270
                %v272 = vld [vmem:[%s148 + $0x634] sm:%s141]
                %273 = vst [vmem:[%s149 + $0xf4] sm:%s141] %v272
                %v274 = vld [vmem:[%s148 + $0x638] sm:%s141]
                %275 = vst [vmem:[%s149 + $0xf8] sm:%s141] %v274
                %v276 = vld [vmem:[%s148 + $0x63c] sm:%s141]
                %277 = vst [vmem:[%s149 + $0xfc] sm:%s141] %v276
              $region37: #{transition_forward.2} parent=31 // loop_footer
                %s147 = sadd.s32 1, %s143
              $region38: #{transition_forward.2} parent=31 // loop_footer_branch
                %142 = sbr.rel target = $region34
              $region39: #{transition_forward.2} parent=31 // loop_exit
                _
            $region32: #{transition_forward.2} parent=23 // pred_fallthru
              _
          $region24: #{transition_forward.2} parent=19 // pred_fallthru
            _
          %426 = vnop
        $region20: #{transition_forward.2} parent=15 // pred_fallthru
          _
      $region16: #{transition_forward.2} parent=5 // pred_fallthru
        _
      %p427 = scmp.le.s32.totalorder 1, %s9
      %p428 = scmp.lt.s32.totalorder %s9, 9
      %p429 = pnand %p427, %p428
      %p430 = pneg %p429
      // Predicated region
      $region58: #{transition_forward.2} parent=5 // pred_check
        _
      $region59: #{transition_forward.2} parent=5 // pred_check_branch
        %432 = sbr.rel (%p429) target = $region61
      $region60: #{transition_forward.2} parent=5 // pred_region
        %s433 = ssub.s32 %s9, 1
        %s434 = sand.u32 %s38, 1
        %s435 = sand.u32 %s38, 1
        %s436 = smul.addr %s435, 256
        %s437 = scalar_lea.vmem [#allocation2], %s436
        // Predicated region
        $region62: #{transition_forward.2} parent=60 // pred_check
          %p438 = pneg %p51
        $region63: #{transition_forward.2} parent=60 // pred_check_branch
          %440 = sbr.rel (%p438) target = $region65
        $region64: #{transition_forward.2} parent=60 // pred_region
          _
        $region65: #{transition_forward.2} parent=60 // pred_fallthru
          _
        %s441 = sand.u32 %s38, 1
        %s442 = sand.u32 %s38, 1
        %s443 = smul.addr %s442, 256
        %s444 = scalar_lea.vmem [#allocation2], %s443
        %p445 = pneg %p51
        %p446 = pneg %p48
        %p447 = pneg %p77
        %p448 = pneg %p74
        %p449 = scmp.lt.s32.totalorder %s18, 1
        %s450 = scalar_select %p449, %s18, 1
        %s451 = smul.addr %s450, 8
        %s452 = scalar_lea.vmem %s1, %s451
        %p453 = pneg %p103
        %p454 = pneg %p100
        %p455 = scmp.lt.s32.totalorder %s18, 1
        %s456 = scalar_select %p455, %s18, 1
        %s457 = smul.addr %s456, 8
        %s458 = scalar_lea.vmem %s2, %s457
        %s459 = smul.u32 %s18, 4
        %s460 = sadd.s32 %s459, %s19
        %s461 = smul.u32 16, %s460
        %p462 = scmp.lt.s32.totalorder %s18, 1
        %s463 = scalar_select %p462, %s18, 1
        %s464 = smul.addr %s463, 8
        %s465 = scalar_lea.vmem %s1, %s464
        %p466 = scmp.lt.s32.totalorder %s18, 1
        %s467 = scalar_select %p466, %s18, 1
        %s468 = smul.addr %s467, 8
        %s469 = scalar_lea.vmem %s2, %s468
        %p470 = scmp.eq.s32.totalorder %s19, 0
        // Predicated region
        $region66: #{transition_forward.2} parent=60 // pred_check
          %p471 = pneg %p470
        $region67: #{transition_forward.2} parent=60 // pred_check_branch
          %473 = sbr.rel (%p471) target = $region69
        $region68: #{transition_forward.2} parent=60 // pred_region
          %vm474 = vcmask 523264
          %475 = vst.msk [vmem:[%s465] sm:$0xff] %vm474, 0.0
          %476 = vst.msk [vmem:[%s469] sm:$0xff] %vm474, 0.0
        $region69: #{transition_forward.2} parent=60 // pred_fallthru
          _
        %v477 = vld [vmem:[%s437] sm:$0xf]
        %v478 = vld [vmem:[%s437 + $0x4] sm:$0xf]
        %v479 = vld [vmem:[%s437 + $0x8] sm:$0xf]
        %v480 = vld [vmem:[%s437 + $0xc] sm:$0xf]
        %v481 = vld [vmem:[%s437 + $0x10] sm:$0xf]
        %v482 = vld [vmem:[%s437 + $0x14] sm:$0xf]
        %v483 = vld [vmem:[%s437 + $0x18] sm:$0xf]
        %v484 = vld [vmem:[%s437 + $0x1c] sm:$0xf]
        %v485 = vld [vmem:[%s437 + $0x20] sm:$0xf]
        %v486 = vld [vmem:[%s437 + $0x24] sm:$0xf]
        %v487 = vld [vmem:[%s437 + $0x28] sm:$0xf]
        %v488 = vld [vmem:[%s437 + $0x2c] sm:$0xf]
        %v489 = vld [vmem:[%s437 + $0x30] sm:$0xf]
        %v490 = vld [vmem:[%s437 + $0x34] sm:$0xf]
        %v491 = vld [vmem:[%s437 + $0x38] sm:$0xf]
        %v492 = vld [vmem:[%s437 + $0x3c] sm:$0xf]
        %v493 = vld [vmem:[%s437 + $0x40] sm:$0xf]
        %v494 = vld [vmem:[%s437 + $0x44] sm:$0xf]
        %v495 = vld [vmem:[%s437 + $0x48] sm:$0xf]
        %v496 = vld [vmem:[%s437 + $0x4c] sm:$0xf]
        %v497 = vld [vmem:[%s437 + $0x50] sm:$0xf]
        %v498 = vld [vmem:[%s437 + $0x54] sm:$0xf]
        %v499 = vld [vmem:[%s437 + $0x58] sm:$0xf]
        %v500 = vld [vmem:[%s437 + $0x5c] sm:$0xf]
        %v501 = vld [vmem:[%s437 + $0x60] sm:$0xf]
        %v502 = vld [vmem:[%s437 + $0x64] sm:$0xf]
        %v503 = vld [vmem:[%s437 + $0x68] sm:$0xf]
        %v504 = vld [vmem:[%s437 + $0x6c] sm:$0xf]
        %v505 = vld [vmem:[%s437 + $0x70] sm:$0xf]
        %v506 = vld [vmem:[%s437 + $0x74] sm:$0xf]
        %v507 = vld [vmem:[%s437 + $0x78] sm:$0xf]
        %v508 = vld [vmem:[%s437 + $0x7c] sm:$0xf]
        %v509 = vld [vmem:[%s437 + $0x80] sm:$0xf]
        %v510 = vld [vmem:[%s437 + $0x84] sm:$0xf]
        %v511 = vld [vmem:[%s437 + $0x88] sm:$0xf]
        %v512 = vld [vmem:[%s437 + $0x8c] sm:$0xf]
        %v513 = vld [vmem:[%s437 + $0x90] sm:$0xf]
        %v514 = vld [vmem:[%s437 + $0x94] sm:$0xf]
        %v515 = vld [vmem:[%s437 + $0x98] sm:$0xf]
        %v516 = vld [vmem:[%s437 + $0x9c] sm:$0xf]
        %v517 = vld [vmem:[%s437 + $0xa0] sm:$0xf]
        %v518 = vld [vmem:[%s437 + $0xa4] sm:$0xf]
        %v519 = vld [vmem:[%s437 + $0xa8] sm:$0xf]
        %v520 = vld [vmem:[%s437 + $0xac] sm:$0xf]
        %v521 = vld [vmem:[%s437 + $0xb0] sm:$0xf]
        %v522 = vld [vmem:[%s437 + $0xb4] sm:$0xf]
        %v523 = vld [vmem:[%s437 + $0xb8] sm:$0xf]
        %v524 = vld [vmem:[%s437 + $0xbc] sm:$0xf]
        %v525 = vld [vmem:[%s437 + $0xc0] sm:$0xf]
        %v526 = vld [vmem:[%s437 + $0xc4] sm:$0xf]
        %v527 = vld [vmem:[%s437 + $0xc8] sm:$0xf]
        %v528 = vld [vmem:[%s437 + $0xcc] sm:$0xf]
        %v529 = vld [vmem:[%s437 + $0xd0] sm:$0xf]
        %v530 = vld [vmem:[%s437 + $0xd4] sm:$0xf]
        %v531 = vld [vmem:[%s437 + $0xd8] sm:$0xf]
        %v532 = vld [vmem:[%s437 + $0xdc] sm:$0xf]
        %v533 = vld [vmem:[%s437 + $0xe0] sm:$0xf]
        %v534 = vld [vmem:[%s437 + $0xe4] sm:$0xf]
        %v535 = vld [vmem:[%s437 + $0xe8] sm:$0xf]
        %v536 = vld [vmem:[%s437 + $0xec] sm:$0xf]
        %v537 = vld [vmem:[%s437 + $0xf0] sm:$0xf]
        %v538 = vld [vmem:[%s437 + $0xf4] sm:$0xf]
        %v539 = vld [vmem:[%s437 + $0xf8] sm:$0xf]
        %v540 = vld [vmem:[%s437 + $0xfc] sm:$0xf]
        %v541 = vunpack.c.l.bf16 %v477
        %v542 = vunpack.c.l.bf16 %v478
        %v543 = vunpack.c.l.bf16 %v479
        %v544 = vunpack.c.l.bf16 %v480
        %v545 = vunpack.c.l.bf16 %v481
        %v546 = vunpack.c.l.bf16 %v482
        %v547 = vunpack.c.l.bf16 %v483
        %v548 = vunpack.c.l.bf16 %v484
        %v549 = vunpack.c.l.bf16 %v485
        %v550 = vunpack.c.l.bf16 %v486
        %v551 = vunpack.c.l.bf16 %v487
        %v552 = vunpack.c.l.bf16 %v488
        %v553 = vunpack.c.l.bf16 %v489
        %v554 = vunpack.c.l.bf16 %v490
        %v555 = vunpack.c.l.bf16 %v491
        %v556 = vunpack.c.l.bf16 %v492
        %v557 = vunpack.c.l.bf16 %v493
        %v558 = vunpack.c.l.bf16 %v494
        %v559 = vunpack.c.l.bf16 %v495
        %v560 = vunpack.c.l.bf16 %v496
        %v561 = vunpack.c.l.bf16 %v497
        %v562 = vunpack.c.l.bf16 %v498
        %v563 = vunpack.c.l.bf16 %v499
        %v564 = vunpack.c.l.bf16 %v500
        %v565 = vunpack.c.l.bf16 %v501
        %v566 = vunpack.c.l.bf16 %v502
        %v567 = vunpack.c.l.bf16 %v503
        %v568 = vunpack.c.l.bf16 %v504
        %v569 = vunpack.c.l.bf16 %v505
        %v570 = vunpack.c.l.bf16 %v506
        %v571 = vunpack.c.l.bf16 %v507
        %v572 = vunpack.c.l.bf16 %v508
        %v573 = vunpack.c.l.bf16 %v509
        %v574 = vunpack.c.l.bf16 %v510
        %v575 = vunpack.c.l.bf16 %v511
        %v576 = vunpack.c.l.bf16 %v512
        %v577 = vunpack.c.l.bf16 %v513
        %v578 = vunpack.c.l.bf16 %v514
        %v579 = vunpack.c.l.bf16 %v515
        %v580 = vunpack.c.l.bf16 %v516
        %v581 = vunpack.c.l.bf16 %v517
        %v582 = vunpack.c.l.bf16 %v518
        %v583 = vunpack.c.l.bf16 %v519
        %v584 = vunpack.c.l.bf16 %v520
        %v585 = vunpack.c.l.bf16 %v521
        %v586 = vunpack.c.l.bf16 %v522
        %v587 = vunpack.c.l.bf16 %v523
        %v588 = vunpack.c.l.bf16 %v524
        %v589 = vunpack.c.l.bf16 %v525
        %v590 = vunpack.c.l.bf16 %v526
        %v591 = vunpack.c.l.bf16 %v527
        %v592 = vunpack.c.l.bf16 %v528
        %v593 = vunpack.c.l.bf16 %v529
        %v594 = vunpack.c.l.bf16 %v530
        %v595 = vunpack.c.l.bf16 %v531
        %v596 = vunpack.c.l.bf16 %v532
        %v597 = vunpack.c.l.bf16 %v533
        %v598 = vunpack.c.l.bf16 %v534
        %v599 = vunpack.c.l.bf16 %v535
        %v600 = vunpack.c.l.bf16 %v536
        %v601 = vunpack.c.l.bf16 %v537
        %v602 = vunpack.c.l.bf16 %v538
        %v603 = vunpack.c.l.bf16 %v539
        %v604 = vunpack.c.l.bf16 %v540
        %vm605 = vcmask 523264
        %v606 = vsel %vm605, %v541, 0.0
        %v607 = vsel %vm605, %v557, 0.0
        %v608 = vadd.f32 %v606, %v607
        %v609 = vsel %vm605, %v573, 0.0
        %v610 = vadd.f32 %v608, %v609
        %v611 = vsel %vm605, %v589, 0.0
        %v612 = vadd.f32 %v610, %v611
        %v613 = vsel %vm605, %v542, 0.0
        %v614 = vsel %vm605, %v558, 0.0
        %v615 = vadd.f32 %v613, %v614
        %v616 = vsel %vm605, %v574, 0.0
        %v617 = vadd.f32 %v615, %v616
        %v618 = vsel %vm605, %v590, 0.0
        %v619 = vadd.f32 %v617, %v618
        %v620 = vsel %vm605, %v543, 0.0
        %v621 = vsel %vm605, %v559, 0.0
        %v622 = vadd.f32 %v620, %v621
        %v623 = vsel %vm605, %v575, 0.0
        %v624 = vadd.f32 %v622, %v623
        %v625 = vsel %vm605, %v591, 0.0
        %v626 = vadd.f32 %v624, %v625
        %v627 = vsel %vm605, %v544, 0.0
        %v628 = vsel %vm605, %v560, 0.0
        %v629 = vadd.f32 %v627, %v628
        %v630 = vsel %vm605, %v576, 0.0
        %v631 = vadd.f32 %v629, %v630
        %v632 = vsel %vm605, %v592, 0.0
        %v633 = vadd.f32 %v631, %v632
        %v634 = vsel %vm605, %v545, 0.0
        %v635 = vsel %vm605, %v561, 0.0
        %v636 = vadd.f32 %v634, %v635
        %v637 = vsel %vm605, %v577, 0.0
        %v638 = vadd.f32 %v636, %v637
        %v639 = vsel %vm605, %v593, 0.0
        %v640 = vadd.f32 %v638, %v639
        %v641 = vsel %vm605, %v546, 0.0
        %v642 = vsel %vm605, %v562, 0.0
        %v643 = vadd.f32 %v641, %v642
        %v644 = vsel %vm605, %v578, 0.0
        %v645 = vadd.f32 %v643, %v644
        %v646 = vsel %vm605, %v594, 0.0
        %v647 = vadd.f32 %v645, %v646
        %v648 = vsel %vm605, %v547, 0.0
        %v649 = vsel %vm605, %v563, 0.0
        %v650 = vadd.f32 %v648, %v649
        %v651 = vsel %vm605, %v579, 0.0
        %v652 = vadd.f32 %v650, %v651
        %v653 = vsel %vm605, %v595, 0.0
        %v654 = vadd.f32 %v652, %v653
        %v655 = vsel %vm605, %v548, 0.0
        %v656 = vsel %vm605, %v564, 0.0
        %v657 = vadd.f32 %v655, %v656
        %v658 = vsel %vm605, %v580, 0.0
        %v659 = vadd.f32 %v657, %v658
        %v660 = vsel %vm605, %v596, 0.0
        %v661 = vadd.f32 %v659, %v660
        %v662 = vsel %vm605, %v549, 0.0
        %v663 = vsel %vm605, %v565, 0.0
        %v664 = vadd.f32 %v662, %v663
        %v665 = vsel %vm605, %v581, 0.0
        %v666 = vadd.f32 %v664, %v665
        %v667 = vsel %vm605, %v597, 0.0
        %v668 = vadd.f32 %v666, %v667
        %v669 = vsel %vm605, %v550, 0.0
        %v670 = vsel %vm605, %v566, 0.0
        %v671 = vadd.f32 %v669, %v670
        %v672 = vsel %vm605, %v582, 0.0
        %v673 = vadd.f32 %v671, %v672
        %v674 = vsel %vm605, %v598, 0.0
        %v675 = vadd.f32 %v673, %v674
        %v676 = vsel %vm605, %v551, 0.0
        %v677 = vsel %vm605, %v567, 0.0
        %v678 = vadd.f32 %v676, %v677
        %v679 = vsel %vm605, %v583, 0.0
        %v680 = vadd.f32 %v678, %v679
        %v681 = vsel %vm605, %v599, 0.0
        %v682 = vadd.f32 %v680, %v681
        %v683 = vsel %vm605, %v552, 0.0
        %v684 = vsel %vm605, %v568, 0.0
        %v685 = vadd.f32 %v683, %v684
        %v686 = vsel %vm605, %v584, 0.0
        %v687 = vadd.f32 %v685, %v686
        %v688 = vsel %vm605, %v600, 0.0
        %v689 = vadd.f32 %v687, %v688
        %v690 = vsel %vm605, %v553, 0.0
        %v691 = vsel %vm605, %v569, 0.0
        %v692 = vadd.f32 %v690, %v691
        %v693 = vsel %vm605, %v585, 0.0
        %v694 = vadd.f32 %v692, %v693
        %v695 = vsel %vm605, %v601, 0.0
        %v696 = vadd.f32 %v694, %v695
        %v697 = vsel %vm605, %v554, 0.0
        %v698 = vsel %vm605, %v570, 0.0
        %v699 = vadd.f32 %v697, %v698
        %v700 = vsel %vm605, %v586, 0.0
        %v701 = vadd.f32 %v699, %v700
        %v702 = vsel %vm605, %v602, 0.0
        %v703 = vadd.f32 %v701, %v702
        %v704 = vsel %vm605, %v555, 0.0
        %v705 = vsel %vm605, %v571, 0.0
        %v706 = vadd.f32 %v704, %v705
        %v707 = vsel %vm605, %v587, 0.0
        %v708 = vadd.f32 %v706, %v707
        %v709 = vsel %vm605, %v603, 0.0
        %v710 = vadd.f32 %v708, %v709
        %v711 = vsel %vm605, %v556, 0.0
        %v712 = vsel %vm605, %v572, 0.0
        %v713 = vadd.f32 %v711, %v712
        %v714 = vsel %vm605, %v588, 0.0
        %v715 = vadd.f32 %v713, %v714
        %v716 = vsel %vm605, %v604, 0.0
        %v717 = vadd.f32 %v715, %v716
        %v718 = vsel %vm605, %v612, 0.0
        %v719 = vsel %vm605, %v619, 0.0
        %v720 = vadd.f32 %v718, %v719
        %v721 = vsel %vm605, %v626, 0.0
        %v722 = vadd.f32 %v720, %v721
        %v723 = vsel %vm605, %v633, 0.0
        %v724 = vadd.f32 %v722, %v723
        %v725 = vsel %vm605, %v640, 0.0
        %v726 = vadd.f32 %v724, %v725
        %v727 = vsel %vm605, %v647, 0.0
        %v728 = vadd.f32 %v726, %v727
        %v729 = vsel %vm605, %v654, 0.0
        %v730 = vadd.f32 %v728, %v729
        %v731 = vsel %vm605, %v661, 0.0
        %v732 = vadd.f32 %v730, %v731
        %v733 = vsel %vm605, %v668, 0.0
        %v734 = vadd.f32 %v732, %v733
        %v735 = vsel %vm605, %v675, 0.0
        %v736 = vadd.f32 %v734, %v735
        %v737 = vsel %vm605, %v682, 0.0
        %v738 = vadd.f32 %v736, %v737
        %v739 = vsel %vm605, %v689, 0.0
        %v740 = vadd.f32 %v738, %v739
        %v741 = vsel %vm605, %v696, 0.0
        %v742 = vadd.f32 %v740, %v741
        %v743 = vsel %vm605, %v703, 0.0
        %v744 = vadd.f32 %v742, %v743
        %v745 = vsel %vm605, %v710, 0.0
        %v746 = vadd.f32 %v744, %v745
        %v747 = vsel %vm605, %v717, 0.0
        %v748 = vadd.f32 %v746, %v747
        %v749 = vrot.slane %v748, 4
        %v750 = vadd.f32 %v748, %v749
        %v751 = vrot.slane %v750, 2
        %v752 = vadd.f32 %v750, %v751
        %v753 = vrot.slane %v752, 1
        %v754 = vadd.f32 %v752, %v753
        %v755 = vrcp.pop 512.0
        %v756 = vmul.f32 512.0, %v755
        %v757 = vsub.f32 1.0, %v756
        %v758 = vmul.f32 %v755, %v757
        %v759 = vadd.f32 %v755, %v758
        %vm760 = vweird.f32 %v755
        %v761 = vsel %vm760, %v755, %v759
        %v762 = vmul.f32 %v754, %v761
        %v763 = vsub.f32 %v541, %v762
        %v764 = vsub.f32 %v542, %v762
        %v765 = vsub.f32 %v543, %v762
        %v766 = vsub.f32 %v544, %v762
        %v767 = vsub.f32 %v545, %v762
        %v768 = vsub.f32 %v546, %v762
        %v769 = vsub.f32 %v547, %v762
        %v770 = vsub.f32 %v548, %v762
        %v771 = vsub.f32 %v549, %v762
        %v772 = vsub.f32 %v550, %v762
        %v773 = vsub.f32 %v551, %v762
        %v774 = vsub.f32 %v552, %v762
        %v775 = vsub.f32 %v553, %v762
        %v776 = vsub.f32 %v554, %v762
        %v777 = vsub.f32 %v555, %v762
        %v778 = vsub.f32 %v556, %v762
        %v779 = vsub.f32 %v557, %v762
        %v780 = vsub.f32 %v558, %v762
        %v781 = vsub.f32 %v559, %v762
        %v782 = vsub.f32 %v560, %v762
        %v783 = vsub.f32 %v561, %v762
        %v784 = vsub.f32 %v562, %v762
        %v785 = vsub.f32 %v563, %v762
        %v786 = vsub.f32 %v564, %v762
        %v787 = vsub.f32 %v565, %v762
        %v788 = vsub.f32 %v566, %v762
        %v789 = vsub.f32 %v567, %v762
        %v790 = vsub.f32 %v568, %v762
        %v791 = vsub.f32 %v569, %v762
        %v792 = vsub.f32 %v570, %v762
        %v793 = vsub.f32 %v571, %v762
        %v794 = vsub.f32 %v572, %v762
        %v795 = vsub.f32 %v573, %v762
        %v796 = vsub.f32 %v574, %v762
        %v797 = vsub.f32 %v575, %v762
        %v798 = vsub.f32 %v576, %v762
        %v799 = vsub.f32 %v577, %v762
        %v800 = vsub.f32 %v578, %v762
        %v801 = vsub.f32 %v579, %v762
        %v802 = vsub.f32 %v580, %v762
        %v803 = vsub.f32 %v581, %v762
        %v804 = vsub.f32 %v582, %v762
        %v805 = vsub.f32 %v583, %v762
        %v806 = vsub.f32 %v584, %v762
        %v807 = vsub.f32 %v585, %v762
        %v808 = vsub.f32 %v586, %v762
        %v809 = vsub.f32 %v587, %v762
        %v810 = vsub.f32 %v588, %v762
        %v811 = vsub.f32 %v589, %v762
        %v812 = vsub.f32 %v590, %v762
        %v813 = vsub.f32 %v591, %v762
        %v814 = vsub.f32 %v592, %v762
        %v815 = vsub.f32 %v593, %v762
        %v816 = vsub.f32 %v594, %v762
        %v817 = vsub.f32 %v595, %v762
        %v818 = vsub.f32 %v596, %v762
        %v819 = vsub.f32 %v597, %v762
        %v820 = vsub.f32 %v598, %v762
        %v821 = vsub.f32 %v599, %v762
        %v822 = vsub.f32 %v600, %v762
        %v823 = vsub.f32 %v601, %v762
        %v824 = vsub.f32 %v602, %v762
        %v825 = vsub.f32 %v603, %v762
        %v826 = vsub.f32 %v604, %v762
        %v827 = vmul.f32 %v763, %v763
        %v828 = vmul.f32 %v764, %v764
        %v829 = vmul.f32 %v765, %v765
        %v830 = vmul.f32 %v766, %v766
        %v831 = vmul.f32 %v767, %v767
        %v832 = vmul.f32 %v768, %v768
        %v833 = vmul.f32 %v769, %v769
        %v834 = vmul.f32 %v770, %v770
        %v835 = vmul.f32 %v771, %v771
        %v836 = vmul.f32 %v772, %v772
        %v837 = vmul.f32 %v773, %v773
        %v838 = vmul.f32 %v774, %v774
        %v839 = vmul.f32 %v775, %v775
        %v840 = vmul.f32 %v776, %v776
        %v841 = vmul.f32 %v777, %v777
        %v842 = vmul.f32 %v778, %v778
        %v843 = vmul.f32 %v779, %v779
        %v844 = vmul.f32 %v780, %v780
        %v845 = vmul.f32 %v781, %v781
        %v846 = vmul.f32 %v782, %v782
        %v847 = vmul.f32 %v783, %v783
        %v848 = vmul.f32 %v784, %v784
        %v849 = vmul.f32 %v785, %v785
        %v850 = vmul.f32 %v786, %v786
        %v851 = vmul.f32 %v787, %v787
        %v852 = vmul.f32 %v788, %v788
        %v853 = vmul.f32 %v789, %v789
        %v854 = vmul.f32 %v790, %v790
        %v855 = vmul.f32 %v791, %v791
        %v856 = vmul.f32 %v792, %v792
        %v857 = vmul.f32 %v793, %v793
        %v858 = vmul.f32 %v794, %v794
        %v859 = vmul.f32 %v795, %v795
        %v860 = vmul.f32 %v796, %v796
        %v861 = vmul.f32 %v797, %v797
        %v862 = vmul.f32 %v798, %v798
        %v863 = vmul.f32 %v799, %v799
        %v864 = vmul.f32 %v800, %v800
        %v865 = vmul.f32 %v801, %v801
        %v866 = vmul.f32 %v802, %v802
        %v867 = vmul.f32 %v803, %v803
        %v868 = vmul.f32 %v804, %v804
        %v869 = vmul.f32 %v805, %v805
        %v870 = vmul.f32 %v806, %v806
        %v871 = vmul.f32 %v807, %v807
        %v872 = vmul.f32 %v808, %v808
        %v873 = vmul.f32 %v809, %v809
        %v874 = vmul.f32 %v810, %v810
        %v875 = vmul.f32 %v811, %v811
        %v876 = vmul.f32 %v812, %v812
        %v877 = vmul.f32 %v813, %v813
        %v878 = vmul.f32 %v814, %v814
        %v879 = vmul.f32 %v815, %v815
        %v880 = vmul.f32 %v816, %v816
        %v881 = vmul.f32 %v817, %v817
        %v882 = vmul.f32 %v818, %v818
        %v883 = vmul.f32 %v819, %v819
        %v884 = vmul.f32 %v820, %v820
        %v885 = vmul.f32 %v821, %v821
        %v886 = vmul.f32 %v822, %v822
        %v887 = vmul.f32 %v823, %v823
        %v888 = vmul.f32 %v824, %v824
        %v889 = vmul.f32 %v825, %v825
        %v890 = vmul.f32 %v826, %v826
        %v891 = vsel %vm605, %v827, 0.0
        %v892 = vsel %vm605, %v843, 0.0
        %v893 = vadd.f32 %v891, %v892
        %v894 = vsel %vm605, %v859, 0.0
        %v895 = vadd.f32 %v893, %v894
        %v896 = vsel %vm605, %v875, 0.0
        %v897 = vadd.f32 %v895, %v896
        %v898 = vsel %vm605, %v828, 0.0
        %v899 = vsel %vm605, %v844, 0.0
        %v900 = vadd.f32 %v898, %v899
        %v901 = vsel %vm605, %v860, 0.0
        %v902 = vadd.f32 %v900, %v901
        %v903 = vsel %vm605, %v876, 0.0
        %v904 = vadd.f32 %v902, %v903
        %v905 = vsel %vm605, %v829, 0.0
        %v906 = vsel %vm605, %v845, 0.0
        %v907 = vadd.f32 %v905, %v906
        %v908 = vsel %vm605, %v861, 0.0
        %v909 = vadd.f32 %v907, %v908
        %v910 = vsel %vm605, %v877, 0.0
        %v911 = vadd.f32 %v909, %v910
        %v912 = vsel %vm605, %v830, 0.0
        %v913 = vsel %vm605, %v846, 0.0
        %v914 = vadd.f32 %v912, %v913
        %v915 = vsel %vm605, %v862, 0.0
        %v916 = vadd.f32 %v914, %v915
        %v917 = vsel %vm605, %v878, 0.0
        %v918 = vadd.f32 %v916, %v917
        %v919 = vsel %vm605, %v831, 0.0
        %v920 = vsel %vm605, %v847, 0.0
        %v921 = vadd.f32 %v919, %v920
        %v922 = vsel %vm605, %v863, 0.0
        %v923 = vadd.f32 %v921, %v922
        %v924 = vsel %vm605, %v879, 0.0
        %v925 = vadd.f32 %v923, %v924
        %v926 = vsel %vm605, %v832, 0.0
        %v927 = vsel %vm605, %v848, 0.0
        %v928 = vadd.f32 %v926, %v927
        %v929 = vsel %vm605, %v864, 0.0
        %v930 = vadd.f32 %v928, %v929
        %v931 = vsel %vm605, %v880, 0.0
        %v932 = vadd.f32 %v930, %v931
        %v933 = vsel %vm605, %v833, 0.0
        %v934 = vsel %vm605, %v849, 0.0
        %v935 = vadd.f32 %v933, %v934
        %v936 = vsel %vm605, %v865, 0.0
        %v937 = vadd.f32 %v935, %v936
        %v938 = vsel %vm605, %v881, 0.0
        %v939 = vadd.f32 %v937, %v938
        %v940 = vsel %vm605, %v834, 0.0
        %v941 = vsel %vm605, %v850, 0.0
        %v942 = vadd.f32 %v940, %v941
        %v943 = vsel %vm605, %v866, 0.0
        %v944 = vadd.f32 %v942, %v943
        %v945 = vsel %vm605, %v882, 0.0
        %v946 = vadd.f32 %v944, %v945
        %v947 = vsel %vm605, %v835, 0.0
        %v948 = vsel %vm605, %v851, 0.0
        %v949 = vadd.f32 %v947, %v948
        %v950 = vsel %vm605, %v867, 0.0
        %v951 = vadd.f32 %v949, %v950
        %v952 = vsel %vm605, %v883, 0.0
        %v953 = vadd.f32 %v951, %v952
        %v954 = vsel %vm605, %v836, 0.0
        %v955 = vsel %vm605, %v852, 0.0
        %v956 = vadd.f32 %v954, %v955
        %v957 = vsel %vm605, %v868, 0.0
        %v958 = vadd.f32 %v956, %v957
        %v959 = vsel %vm605, %v884, 0.0
        %v960 = vadd.f32 %v958, %v959
        %v961 = vsel %vm605, %v837, 0.0
        %v962 = vsel %vm605, %v853, 0.0
        %v963 = vadd.f32 %v961, %v962
        %v964 = vsel %vm605, %v869, 0.0
        %v965 = vadd.f32 %v963, %v964
        %v966 = vsel %vm605, %v885, 0.0
        %v967 = vadd.f32 %v965, %v966
        %v968 = vsel %vm605, %v838, 0.0
        %v969 = vsel %vm605, %v854, 0.0
        %v970 = vadd.f32 %v968, %v969
        %v971 = vsel %vm605, %v870, 0.0
        %v972 = vadd.f32 %v970, %v971
        %v973 = vsel %vm605, %v886, 0.0
        %v974 = vadd.f32 %v972, %v973
        %v975 = vsel %vm605, %v839, 0.0
        %v976 = vsel %vm605, %v855, 0.0
        %v977 = vadd.f32 %v975, %v976
        %v978 = vsel %vm605, %v871, 0.0
        %v979 = vadd.f32 %v977, %v978
        %v980 = vsel %vm605, %v887, 0.0
        %v981 = vadd.f32 %v979, %v980
        %v982 = vsel %vm605, %v840, 0.0
        %v983 = vsel %vm605, %v856, 0.0
        %v984 = vadd.f32 %v982, %v983
        %v985 = vsel %vm605, %v872, 0.0
        %v986 = vadd.f32 %v984, %v985
        %v987 = vsel %vm605, %v888, 0.0
        %v988 = vadd.f32 %v986, %v987
        %v989 = vsel %vm605, %v841, 0.0
        %v990 = vsel %vm605, %v857, 0.0
        %v991 = vadd.f32 %v989, %v990
        %v992 = vsel %vm605, %v873, 0.0
        %v993 = vadd.f32 %v991, %v992
        %v994 = vsel %vm605, %v889, 0.0
        %v995 = vadd.f32 %v993, %v994
        %v996 = vsel %vm605, %v842, 0.0
        %v997 = vsel %vm605, %v858, 0.0
        %v998 = vadd.f32 %v996, %v997
        %v999 = vsel %vm605, %v874, 0.0
        %v1000 = vadd.f32 %v998, %v999
        %v1001 = vsel %vm605, %v890, 0.0
        %v1002 = vadd.f32 %v1000, %v1001
        %v1003 = vsel %vm605, %v897, 0.0
        %v1004 = vsel %vm605, %v904, 0.0
        %v1005 = vadd.f32 %v1003, %v1004
        %v1006 = vsel %vm605, %v911, 0.0
        %v1007 = vadd.f32 %v1005, %v1006
        %v1008 = vsel %vm605, %v918, 0.0
        %v1009 = vadd.f32 %v1007, %v1008
        %v1010 = vsel %vm605, %v925, 0.0
        %v1011 = vadd.f32 %v1009, %v1010
        %v1012 = vsel %vm605, %v932, 0.0
        %v1013 = vadd.f32 %v1011, %v1012
        %v1014 = vsel %vm605, %v939, 0.0
        %v1015 = vadd.f32 %v1013, %v1014
        %v1016 = vsel %vm605, %v946, 0.0
        %v1017 = vadd.f32 %v1015, %v1016
        %v1018 = vsel %vm605, %v953, 0.0
        %v1019 = vadd.f32 %v1017, %v1018
        %v1020 = vsel %vm605, %v960, 0.0
        %v1021 = vadd.f32 %v1019, %v1020
        %v1022 = vsel %vm605, %v967, 0.0
        %v1023 = vadd.f32 %v1021, %v1022
        %v1024 = vsel %vm605, %v974, 0.0
        %v1025 = vadd.f32 %v1023, %v1024
        %v1026 = vsel %vm605, %v981, 0.0
        %v1027 = vadd.f32 %v1025, %v1026
        %v1028 = vsel %vm605, %v988, 0.0
        %v1029 = vadd.f32 %v1027, %v1028
        %v1030 = vsel %vm605, %v995, 0.0
        %v1031 = vadd.f32 %v1029, %v1030
        %v1032 = vsel %vm605, %v1002, 0.0
        %v1033 = vadd.f32 %v1031, %v1032
        %v1034 = vrot.slane %v1033, 4
        %v1035 = vadd.f32 %v1033, %v1034
        %v1036 = vrot.slane %v1035, 2
        %v1037 = vadd.f32 %v1035, %v1036
        %v1038 = vrot.slane %v1037, 1
        %v1039 = vadd.f32 %v1037, %v1038
        %s1040 = smul.u32 %s19, 512
        %s1041 = scvt.s32.f32 %s1040
        %s1042 = sadd.f32 %s1041, 512.0
        %v1043 = vld [vmem:[%s465] sm:$0xff]
        %v1044 = vsub.f32 %v762, %v1043
        %v1045 = vstv %s1042
        %v1046 = vrcp.pop %v1045
        %v1047 = vmul.f32 %v1045, %v1046
        %v1048 = vsub.f32 1.0, %v1047
        %v1049 = vmul.f32 %v1046, %v1048
        %v1050 = vadd.f32 %v1046, %v1049
        %vm1051 = vweird.f32 %v1045
        %vm1052 = vweird.f32 %v1046
        %vm1053 = vmor %vm1051, %vm1052
        %v1054 = vsel %vm1053, %v1046, %v1050
        %v1055 = vand.u32 2147483647, %v1045
        %vm1056 = vcmp.eq.f32.partialorder %v1055, 8.507059e+37
        %v1057 = vand.u32 %v1045, 2147483648
        %v1058 = vor.u32 1.1754944e-38, %v1057
        %v1059 = vsel %vm1056, %v1058, %v1054
        %s1060 = vtos %v1059
        %s1061 = smul.f32 512.0, %s1060
        %v1062 = vstv %s1061
        %v1063 = vmul.f32 %v1044, %v1062
        %v1064 = vadd.f32 %v1043, %v1063
        %1065 = vst.msk [vmem:[%s465] sm:$0xff] %vm605, %v1064
        %v1066 = vld [vmem:[%s469] sm:$0xff]
        %v1067 = vadd.f32 %v1066, %v1039
        %v1068 = vmul.f32 %v1044, %v1044
        %s1069 = smul.f32 %s1041, 512.0
        %v1070 = vstv %s1042
        %v1071 = vrcp.pop %v1070
        %v1072 = vmul.f32 %v1070, %v1071
        %v1073 = vsub.f32 1.0, %v1072
        %v1074 = vmul.f32 %v1071, %v1073
        %v1075 = vadd.f32 %v1071, %v1074
        %vm1076 = vweird.f32 %v1070
        %vm1077 = vweird.f32 %v1071
        %vm1078 = vmor %vm1076, %vm1077
        %v1079 = vsel %vm1078, %v1071, %v1075
        %v1080 = vand.u32 2147483647, %v1070
        %vm1081 = vcmp.eq.f32.partialorder %v1080, 8.507059e+37
        %v1082 = vand.u32 %v1070, 2147483648
        %v1083 = vor.u32 1.1754944e-38, %v1082
        %v1084 = vsel %vm1081, %v1083, %v1079
        %s1085 = vtos %v1084
        %s1086 = smul.f32 %s1069, %s1085
        %v1087 = vstv %s1086
        %v1088 = vmul.f32 %v1068, %v1087
        %v1089 = vadd.f32 %v1067, %v1088
        %1090 = vst.msk [vmem:[%s469] sm:$0xff] %vm605, %v1089
        %p1091 = scmp.lt.s32.totalorder %s18, 1
        %s1092 = scalar_select %p1091, %s18, 1
        %s1093 = smul.addr %s1092, 8
        %s1094 = scalar_lea.vmem %s1, %s1093
        %p1095 = scmp.lt.s32.totalorder %s18, 1
        %s1096 = scalar_select %p1095, %s18, 1
        %s1097 = smul.addr %s1096, 8
        %s1098 = scalar_lea.vmem %s2, %s1097
        // Predicated region
        $region70: #{transition_forward.2} parent=60 // pred_check
          %p1099 = pneg %p74
        $region71: #{transition_forward.2} parent=60 // pred_check_branch
          %1101 = sbr.rel (%p1099) target = $region73
        $region72: #{transition_forward.2} parent=60 // pred_region
          _
        $region73: #{transition_forward.2} parent=60 // pred_fallthru
          _
        // Predicated region
        $region74: #{transition_forward.2} parent=60 // pred_check
          %p1102 = pneg %p100
        $region75: #{transition_forward.2} parent=60 // pred_check_branch
          %1104 = sbr.rel (%p1102) target = $region77
        $region76: #{transition_forward.2} parent=60 // pred_region
          _
        $region77: #{transition_forward.2} parent=60 // pred_fallthru
          _
      $region61: #{transition_forward.2} parent=5 // pred_fallthru
        _
      %p1105 = scmp.le.s32.totalorder 2, %s9
      // Predicated region
      $region78: #{transition_forward.2} parent=5 // pred_check
        %p1106 = pneg %p1105
      $region79: #{transition_forward.2} parent=5 // pred_check_branch
        %1108 = sbr.rel (%p1106) target = $region81
      $region80: #{transition_forward.2} parent=5 // pred_region
        %s1109 = ssub.s32 %s9, 2
        // Predicated region
        $region82: #{transition_forward.2} parent=80 // pred_check
          %p1110 = pneg %p80
        $region83: #{transition_forward.2} parent=80 // pred_check_branch
          %1112 = sbr.rel (%p1110) target = $region85
        $region84: #{transition_forward.2} parent=80 // pred_region
          %p1113 = scmp.lt.s32.totalorder %s20, 1
          %s1114 = scalar_select %p1113, %s20, 1
          %s1115 = smul.addr %s1114, 8
          %s1116 = scalar_lea.vmem %s1, %s1115
        $region85: #{transition_forward.2} parent=80 // pred_fallthru
          _
        // Predicated region
        $region86: #{transition_forward.2} parent=80 // pred_check
          %p1117 = pneg %p106
        $region87: #{transition_forward.2} parent=80 // pred_check_branch
          %1119 = sbr.rel (%p1117) target = $region89
        $region88: #{transition_forward.2} parent=80 // pred_region
          %p1120 = scmp.lt.s32.totalorder %s20, 1
          %s1121 = scalar_select %p1120, %s20, 1
          %s1122 = smul.addr %s1121, 8
          %s1123 = scalar_lea.vmem %s2, %s1122
        $region89: #{transition_forward.2} parent=80 // pred_fallthru
          _
      $region81: #{transition_forward.2} parent=5 // pred_fallthru
        _
    $region6: #{transition_forward.2} parent=1 // loop_footer
      %s13 = sadd.s32 1, %s9
    $region7: #{transition_forward.2} parent=1 // loop_footer_branch
      %8 = sbr.rel target = $region3
    $region8: #{transition_forward.2} parent=1 // loop_exit
      _

// kernel: transition_forward.3
$region0: #{transition_forward.3}
  #allocation0 [shape = 'u32[]', space=smem, size = 0x4, offset = 0x4, fixed_abs, tag = 'smem constant byte address 0x4 - core index']
  #allocation1 [shape = 'u32[72,128]{1,0:T(1,128)}', space=vmem, size = 0x9000, scoped, tag = 'internal scratch']
  %s0 = inlined_call_operand.vmem [shape: bf16[4,1024,64], index: 0, kind: input, shape index: {}]
  %s1 = inlined_call_operand.vmem [shape: f32[1,64], index: 1, kind: input, shape index: {}]
  %s2 = inlined_call_operand.vmem [shape: f32[1,64], index: 2, kind: input, shape index: {}]
  %s3 = inlined_call_operand.vmem [shape: bf16[64,128], index: 3, kind: input, shape index: {}]
  %s4 = inlined_call_operand.vmem [shape: bf16[1024,128], index: 4, kind: output, shape index: {}]
  %s5 = sld [smem:[#allocation0]]
  $region90: #{transition_forward.3} parent=0
    _
  %s7 = ssub.s32 1, %s5
  %s8 = scalar_select 0, %s7, %s5
  $region1: #{transition_forward.3} parent=0
    #allocation2 [shape = 'u8[262144]{0}', space=vmem, size = 0x40000, scoped, tag = 'input window, operand 0']
    loop: start=0, step=1, limit=10
    $region2: #{transition_forward.3} parent=1 // loop_pre_header
      _
    $region3: #{transition_forward.3} parent=1 // loop_header
      %s10 = sphi 0, %s14
      %p11 = scmp.ge.s32.totalorder %s10, 10
      %s20 = sphi 0, %s22
      %s23 = sphi 0, %s20
      %s24 = sphi 0, %s23
      %s40 = sphi 0, %s24
      %s44 = sphi 0, %s44
      %s46 = sphi 0, %s44
      %s47 = sphi 0, %s46
      %s61 = sphi 0, %s47
      %s65 = sphi 0, %s65
      %s67 = sphi 0, %s65
      %s68 = sphi 0, %s67
      %s82 = sphi 0, %s68
      %s86 = sphi 0, %s86
      %s88 = sphi 0, %s86
      %s89 = sphi 0, %s88
      %s103 = sphi 0, %s89
      %s109 = sphi 0, %s111
      %s112 = sphi 0, %s109
      %s113 = sphi 0, %s112
      %s129 = sphi 0, %s113
    $region4: #{transition_forward.3} parent=1 // loop_header_branch
      %13 = sbr.rel (%p11) target = $region8
    $region5: #{transition_forward.3} parent=1 // loop_body
      %s15 = ssub.s32 %s10, 1
      %s16 = ssub.s32 %s10, 2
      %s17 = sadd.s32 %s10, 1
      %s18 = ssub.s32 %s10, %s17
      %p19 = scmp.eq.s32.totalorder %s18, 0
      %s21 = sadd.s32 %s20, 1
      %s22 = scalar_select %p19, %s20, %s21
      %p25 = pneg %p19
      %p26 = scmp.eq.s32.totalorder %s10, 7
      %p27 = por %p25, %p26
      %p28 = scmp.ne.s32.totalorder %s20, %s23
      %p29 = scmp.eq.s32.totalorder %s10, 0
      %p30 = por %p28, %p29
      %p31 = scmp.ne.s32.totalorder %s20, %s23
      %p32 = scmp.eq.s32.totalorder %s15, 7
      %p33 = por %p31, %p32
      %p34 = scmp.ne.s32.totalorder %s23, %s24
      %p35 = scmp.eq.s32.totalorder %s15, 0
      %p36 = por %p34, %p35
      %p37 = scmp.ne.s32.totalorder %s23, %s24
      %p38 = scmp.eq.s32.totalorder %s16, 7
      %p39 = por %p37, %p38
      %p41 = scmp.ne.s32.totalorder %s24, %s40
      %p42 = scmp.eq.s32.totalorder %s16, 0
      %p43 = por %p41, %p42
      %s45 = sadd.s32 %s44, 1
      %p48 = scmp.eq.s32.totalorder %s10, 7
      %p49 = scmp.ne.s32.totalorder %s44, %s46
      %p50 = scmp.eq.s32.totalorder %s10, 0
      %p51 = por %p49, %p50
      %p52 = scmp.ne.s32.totalorder %s44, %s46
      %p53 = scmp.eq.s32.totalorder %s15, 7
      %p54 = por %p52, %p53
      %p55 = scmp.ne.s32.totalorder %s46, %s47
      %p56 = scmp.eq.s32.totalorder %s15, 0
      %p57 = por %p55, %p56
      %p58 = scmp.ne.s32.totalorder %s46, %s47
      %p59 = scmp.eq.s32.totalorder %s16, 7
      %p60 = por %p58, %p59
      %p62 = scmp.ne.s32.totalorder %s47, %s61
      %p63 = scmp.eq.s32.totalorder %s16, 0
      %p64 = por %p62, %p63
      %s66 = sadd.s32 %s65, 1
      %p69 = scmp.eq.s32.totalorder %s10, 7
      %p70 = scmp.ne.s32.totalorder %s65, %s67
      %p71 = scmp.eq.s32.totalorder %s10, 0
      %p72 = por %p70, %p71
      %p73 = scmp.ne.s32.totalorder %s65, %s67
      %p74 = scmp.eq.s32.totalorder %s15, 7
      %p75 = por %p73, %p74
      %p76 = scmp.ne.s32.totalorder %s67, %s68
      %p77 = scmp.eq.s32.totalorder %s15, 0
      %p78 = por %p76, %p77
      %p79 = scmp.ne.s32.totalorder %s67, %s68
      %p80 = scmp.eq.s32.totalorder %s16, 7
      %p81 = por %p79, %p80
      %p83 = scmp.ne.s32.totalorder %s68, %s82
      %p84 = scmp.eq.s32.totalorder %s16, 0
      %p85 = por %p83, %p84
      %s87 = sadd.s32 %s86, 1
      %p90 = scmp.eq.s32.totalorder %s10, 7
      %p91 = scmp.ne.s32.totalorder %s86, %s88
      %p92 = scmp.eq.s32.totalorder %s10, 0
      %p93 = por %p91, %p92
      %p94 = scmp.ne.s32.totalorder %s86, %s88
      %p95 = scmp.eq.s32.totalorder %s15, 7
      %p96 = por %p94, %p95
      %p97 = scmp.ne.s32.totalorder %s88, %s89
      %p98 = scmp.eq.s32.totalorder %s15, 0
      %p99 = por %p97, %p98
      %p100 = scmp.ne.s32.totalorder %s88, %s89
      %p101 = scmp.eq.s32.totalorder %s16, 7
      %p102 = por %p100, %p101
      %p104 = scmp.ne.s32.totalorder %s89, %s103
      %p105 = scmp.eq.s32.totalorder %s16, 0
      %p106 = por %p104, %p105
      %s107 = ssub.s32 %s10, %s17
      %p108 = scmp.eq.s32.totalorder %s107, 0
      %s110 = sadd.s32 %s109, 1
      %s111 = scalar_select %p108, %s109, %s110
      %p114 = pneg %p108
      %p115 = scmp.eq.s32.totalorder %s10, 7
      %p116 = por %p114, %p115
      %p117 = scmp.ne.s32.totalorder %s109, %s112
      %p118 = scmp.eq.s32.totalorder %s10, 0
      %p119 = por %p117, %p118
      %p120 = scmp.ne.s32.totalorder %s109, %s112
      %p121 = scmp.eq.s32.totalorder %s15, 7
      %p122 = por %p120, %p121
      %p123 = scmp.ne.s32.totalorder %s112, %s113
      %p124 = scmp.eq.s32.totalorder %s15, 0
      %p125 = por %p123, %p124
      %p126 = scmp.ne.s32.totalorder %s112, %s113
      %p127 = scmp.eq.s32.totalorder %s16, 7
      %p128 = por %p126, %p127
      %p130 = scmp.ne.s32.totalorder %s113, %s129
      %p131 = scmp.eq.s32.totalorder %s16, 0
      %p132 = por %p130, %p131
      %p133 = scmp.le.s32.totalorder 1, %s10
      %p134 = scmp.lt.s32.totalorder %s10, 9
      %p135 = pnand %p133, %p134
      %p136 = pneg %p135
      // Predicated region
      $region9: #{transition_forward.3} parent=5 // pred_check
        _
      $region10: #{transition_forward.3} parent=5 // pred_check_branch
        %138 = sbr.rel (%p135) target = $region12
      $region11: #{transition_forward.3} parent=5 // pred_region
        %s139 = ssub.s32 %s10, 1
        // Predicated region
        $region13: #{transition_forward.3} parent=11 // pred_check
          %p140 = pneg %p57
        $region14: #{transition_forward.3} parent=11 // pred_check_branch
          %142 = sbr.rel (%p140) target = $region16
        $region15: #{transition_forward.3} parent=11 // pred_region
          _
        $region16: #{transition_forward.3} parent=11 // pred_fallthru
          _
        // Predicated region
        $region17: #{transition_forward.3} parent=11 // pred_check
          %p143 = pneg %p78
        $region18: #{transition_forward.3} parent=11 // pred_check_branch
          %145 = sbr.rel (%p143) target = $region20
        $region19: #{transition_forward.3} parent=11 // pred_region
          _
        $region20: #{transition_forward.3} parent=11 // pred_fallthru
          _
        // Predicated region
        $region21: #{transition_forward.3} parent=11 // pred_check
          %p146 = pneg %p99
        $region22: #{transition_forward.3} parent=11 // pred_check_branch
          %148 = sbr.rel (%p146) target = $region24
        $region23: #{transition_forward.3} parent=11 // pred_region
          _
        $region24: #{transition_forward.3} parent=11 // pred_fallthru
          _
      $region12: #{transition_forward.3} parent=5 // pred_fallthru
        _
      %p149 = scmp.lt.s32.totalorder %s10, 8
      // Predicated region
      $region25: #{transition_forward.3} parent=5 // pred_check
        %p150 = pneg %p149
      $region26: #{transition_forward.3} parent=5 // pred_check_branch
        %152 = sbr.rel (%p150) target = $region28
      $region27: #{transition_forward.3} parent=5 // pred_region
        // Predicated region
        $region29: #{transition_forward.3} parent=27 // pred_check
          %p153 = pneg %p30
        $region30: #{transition_forward.3} parent=27 // pred_check_branch
          %155 = sbr.rel (%p153) target = $region32
        $region31: #{transition_forward.3} parent=27 // pred_region
          %s156 = sand.u32 %s20, 1
          %s157 = sand.u32 %s20, 1
          %s158 = smul.addr %s157, 256
          %s159 = scalar_lea.vmem [#allocation2], %s158
          %s160 = smul.u32 16, %s10
          %s161 = smul.addr %s160, 4
          %s162 = scalar_lea.vmem %s0, %s161
          // Predicated region
          $region33: #{transition_forward.3} parent=31 // pred_check
            _
          $region34: #{transition_forward.3} parent=31 // pred_check_branch
            %164 = sbr.rel (0) target = $region36
          $region35: #{transition_forward.3} parent=31 // pred_region
            // Predicated region
            $region37: #{transition_forward.3} parent=35 // pred_check
              _
            $region38: #{transition_forward.3} parent=35 // pred_check_branch
              %166 = sbr.rel target = $region40
            $region39: #{transition_forward.3} parent=35 // pred_region
              // Predicated region
              $region52: #{transition_forward.3} parent=39 // pred_check
                _
              $region53: #{transition_forward.3} parent=39 // pred_check_branch
                %308 = sbr.rel (0) target = $region55
              $region54: #{transition_forward.3} parent=39 // pred_region
                loop: start=0, step=1, limit=1
                $region56: #{transition_forward.3} parent=54 // loop_pre_header
                  _
                $region57: #{transition_forward.3} parent=54 // loop_header
                  %s310 = sphi 0, %s314
                  %p311 = scmp.ge.s32.totalorder %s310, 1
                  %s315 = sphi %s162, %s162
                  %s316 = sphi %s159, %s159
                $region58: #{transition_forward.3} parent=54 // loop_header_branch
                  %313 = sbr.rel (%p311) target = $region62
                $region59: #{transition_forward.3} parent=54 // loop_body
                  _
                $region60: #{transition_forward.3} parent=54 // loop_footer
                  %s314 = sadd.s32 1, %s310
                $region61: #{transition_forward.3} parent=54 // loop_footer_branch
                  %309 = sbr.rel target = $region57
                $region62: #{transition_forward.3} parent=54 // loop_exit
                  _
                %s318 = ssub.s32 16, 1
                loop: start=0, step=1, limit=1
                $region63: #{transition_forward.3} parent=54 // loop_pre_header
                  _
                $region64: #{transition_forward.3} parent=54 // loop_header
                  %s320 = sphi 0, %s324
                  %p321 = scmp.ge.s32.totalorder %s320, 1
                  %s325 = sphi %s162, %s162
                  %s326 = sphi %s159, %s159
                $region65: #{transition_forward.3} parent=54 // loop_header_branch
                  %323 = sbr.rel (%p321) target = $region69
                $region66: #{transition_forward.3} parent=54 // loop_body
                  %v327 = vld [vmem:[%s325] sm:%s318]
                  %328 = vst [vmem:[%s326] sm:%s318] %v327
                  %v329 = vld [vmem:[%s325 + $0x4] sm:%s318]
                  %330 = vst [vmem:[%s326 + $0x4] sm:%s318] %v329
                  %v331 = vld [vmem:[%s325 + $0x8] sm:%s318]
                  %332 = vst [vmem:[%s326 + $0x8] sm:%s318] %v331
                  %v333 = vld [vmem:[%s325 + $0xc] sm:%s318]
                  %334 = vst [vmem:[%s326 + $0xc] sm:%s318] %v333
                  %v335 = vld [vmem:[%s325 + $0x10] sm:%s318]
                  %336 = vst [vmem:[%s326 + $0x10] sm:%s318] %v335
                  %v337 = vld [vmem:[%s325 + $0x14] sm:%s318]
                  %338 = vst [vmem:[%s326 + $0x14] sm:%s318] %v337
                  %v339 = vld [vmem:[%s325 + $0x18] sm:%s318]
                  %340 = vst [vmem:[%s326 + $0x18] sm:%s318] %v339
                  %v341 = vld [vmem:[%s325 + $0x1c] sm:%s318]
                  %342 = vst [vmem:[%s326 + $0x1c] sm:%s318] %v341
                  %v343 = vld [vmem:[%s325 + $0x20] sm:%s318]
                  %344 = vst [vmem:[%s326 + $0x20] sm:%s318] %v343
                  %v345 = vld [vmem:[%s325 + $0x24] sm:%s318]
                  %346 = vst [vmem:[%s326 + $0x24] sm:%s318] %v345
                  %v347 = vld [vmem:[%s325 + $0x28] sm:%s318]
                  %348 = vst [vmem:[%s326 + $0x28] sm:%s318] %v347
                  %v349 = vld [vmem:[%s325 + $0x2c] sm:%s318]
                  %350 = vst [vmem:[%s326 + $0x2c] sm:%s318] %v349
                  %v351 = vld [vmem:[%s325 + $0x30] sm:%s318]
                  %352 = vst [vmem:[%s326 + $0x30] sm:%s318] %v351
                  %v353 = vld [vmem:[%s325 + $0x34] sm:%s318]
                  %354 = vst [vmem:[%s326 + $0x34] sm:%s318] %v353
                  %v355 = vld [vmem:[%s325 + $0x38] sm:%s318]
                  %356 = vst [vmem:[%s326 + $0x38] sm:%s318] %v355
                  %v357 = vld [vmem:[%s325 + $0x3c] sm:%s318]
                  %358 = vst [vmem:[%s326 + $0x3c] sm:%s318] %v357
                  %v359 = vld [vmem:[%s325 + $0x200] sm:%s318]
                  %360 = vst [vmem:[%s326 + $0x40] sm:%s318] %v359
                  %v361 = vld [vmem:[%s325 + $0x204] sm:%s318]
                  %362 = vst [vmem:[%s326 + $0x44] sm:%s318] %v361
                  %v363 = vld [vmem:[%s325 + $0x208] sm:%s318]
                  %364 = vst [vmem:[%s326 + $0x48] sm:%s318] %v363
                  %v365 = vld [vmem:[%s325 + $0x20c] sm:%s318]
                  %366 = vst [vmem:[%s326 + $0x4c] sm:%s318] %v365
                  %v367 = vld [vmem:[%s325 + $0x210] sm:%s318]
                  %368 = vst [vmem:[%s326 + $0x50] sm:%s318] %v367
                  %v369 = vld [vmem:[%s325 + $0x214] sm:%s318]
                  %370 = vst [vmem:[%s326 + $0x54] sm:%s318] %v369
                  %v371 = vld [vmem:[%s325 + $0x218] sm:%s318]
                  %372 = vst [vmem:[%s326 + $0x58] sm:%s318] %v371
                  %v373 = vld [vmem:[%s325 + $0x21c] sm:%s318]
                  %374 = vst [vmem:[%s326 + $0x5c] sm:%s318] %v373
                  %v375 = vld [vmem:[%s325 + $0x220] sm:%s318]
                  %376 = vst [vmem:[%s326 + $0x60] sm:%s318] %v375
                  %v377 = vld [vmem:[%s325 + $0x224] sm:%s318]
                  %378 = vst [vmem:[%s326 + $0x64] sm:%s318] %v377
                  %v379 = vld [vmem:[%s325 + $0x228] sm:%s318]
                  %380 = vst [vmem:[%s326 + $0x68] sm:%s318] %v379
                  %v381 = vld [vmem:[%s325 + $0x22c] sm:%s318]
                  %382 = vst [vmem:[%s326 + $0x6c] sm:%s318] %v381
                  %v383 = vld [vmem:[%s325 + $0x230] sm:%s318]
                  %384 = vst [vmem:[%s326 + $0x70] sm:%s318] %v383
                  %v385 = vld [vmem:[%s325 + $0x234] sm:%s318]
                  %386 = vst [vmem:[%s326 + $0x74] sm:%s318] %v385
                  %v387 = vld [vmem:[%s325 + $0x238] sm:%s318]
                  %388 = vst [vmem:[%s326 + $0x78] sm:%s318] %v387
                  %v389 = vld [vmem:[%s325 + $0x23c] sm:%s318]
                  %390 = vst [vmem:[%s326 + $0x7c] sm:%s318] %v389
                  %v391 = vld [vmem:[%s325 + $0x400] sm:%s318]
                  %392 = vst [vmem:[%s326 + $0x80] sm:%s318] %v391
                  %v393 = vld [vmem:[%s325 + $0x404] sm:%s318]
                  %394 = vst [vmem:[%s326 + $0x84] sm:%s318] %v393
                  %v395 = vld [vmem:[%s325 + $0x408] sm:%s318]
                  %396 = vst [vmem:[%s326 + $0x88] sm:%s318] %v395
                  %v397 = vld [vmem:[%s325 + $0x40c] sm:%s318]
                  %398 = vst [vmem:[%s326 + $0x8c] sm:%s318] %v397
                  %v399 = vld [vmem:[%s325 + $0x410] sm:%s318]
                  %400 = vst [vmem:[%s326 + $0x90] sm:%s318] %v399
                  %v401 = vld [vmem:[%s325 + $0x414] sm:%s318]
                  %402 = vst [vmem:[%s326 + $0x94] sm:%s318] %v401
                  %v403 = vld [vmem:[%s325 + $0x418] sm:%s318]
                  %404 = vst [vmem:[%s326 + $0x98] sm:%s318] %v403
                  %v405 = vld [vmem:[%s325 + $0x41c] sm:%s318]
                  %406 = vst [vmem:[%s326 + $0x9c] sm:%s318] %v405
                  %v407 = vld [vmem:[%s325 + $0x420] sm:%s318]
                  %408 = vst [vmem:[%s326 + $0xa0] sm:%s318] %v407
                  %v409 = vld [vmem:[%s325 + $0x424] sm:%s318]
                  %410 = vst [vmem:[%s326 + $0xa4] sm:%s318] %v409
                  %v411 = vld [vmem:[%s325 + $0x428] sm:%s318]
                  %412 = vst [vmem:[%s326 + $0xa8] sm:%s318] %v411
                  %v413 = vld [vmem:[%s325 + $0x42c] sm:%s318]
                  %414 = vst [vmem:[%s326 + $0xac] sm:%s318] %v413
                  %v415 = vld [vmem:[%s325 + $0x430] sm:%s318]
                  %416 = vst [vmem:[%s326 + $0xb0] sm:%s318] %v415
                  %v417 = vld [vmem:[%s325 + $0x434] sm:%s318]
                  %418 = vst [vmem:[%s326 + $0xb4] sm:%s318] %v417
                  %v419 = vld [vmem:[%s325 + $0x438] sm:%s318]
                  %420 = vst [vmem:[%s326 + $0xb8] sm:%s318] %v419
                  %v421 = vld [vmem:[%s325 + $0x43c] sm:%s318]
                  %422 = vst [vmem:[%s326 + $0xbc] sm:%s318] %v421
                  %v423 = vld [vmem:[%s325 + $0x600] sm:%s318]
                  %424 = vst [vmem:[%s326 + $0xc0] sm:%s318] %v423
                  %v425 = vld [vmem:[%s325 + $0x604] sm:%s318]
                  %426 = vst [vmem:[%s326 + $0xc4] sm:%s318] %v425
                  %v427 = vld [vmem:[%s325 + $0x608] sm:%s318]
                  %428 = vst [vmem:[%s326 + $0xc8] sm:%s318] %v427
                  %v429 = vld [vmem:[%s325 + $0x60c] sm:%s318]
                  %430 = vst [vmem:[%s326 + $0xcc] sm:%s318] %v429
                  %v431 = vld [vmem:[%s325 + $0x610] sm:%s318]
                  %432 = vst [vmem:[%s326 + $0xd0] sm:%s318] %v431
                  %v433 = vld [vmem:[%s325 + $0x614] sm:%s318]
                  %434 = vst [vmem:[%s326 + $0xd4] sm:%s318] %v433
                  %v435 = vld [vmem:[%s325 + $0x618] sm:%s318]
                  %436 = vst [vmem:[%s326 + $0xd8] sm:%s318] %v435
                  %v437 = vld [vmem:[%s325 + $0x61c] sm:%s318]
                  %438 = vst [vmem:[%s326 + $0xdc] sm:%s318] %v437
                  %v439 = vld [vmem:[%s325 + $0x620] sm:%s318]
                  %440 = vst [vmem:[%s326 + $0xe0] sm:%s318] %v439
                  %v441 = vld [vmem:[%s325 + $0x624] sm:%s318]
                  %442 = vst [vmem:[%s326 + $0xe4] sm:%s318] %v441
                  %v443 = vld [vmem:[%s325 + $0x628] sm:%s318]
                  %444 = vst [vmem:[%s326 + $0xe8] sm:%s318] %v443
                  %v445 = vld [vmem:[%s325 + $0x62c] sm:%s318]
                  %446 = vst [vmem:[%s326 + $0xec] sm:%s318] %v445
                  %v447 = vld [vmem:[%s325 + $0x630] sm:%s318]
                  %448 = vst [vmem:[%s326 + $0xf0] sm:%s318] %v447
                  %v449 = vld [vmem:[%s325 + $0x634] sm:%s318]
                  %450 = vst [vmem:[%s326 + $0xf4] sm:%s318] %v449
                  %v451 = vld [vmem:[%s325 + $0x638] sm:%s318]
                  %452 = vst [vmem:[%s326 + $0xf8] sm:%s318] %v451
                  %v453 = vld [vmem:[%s325 + $0x63c] sm:%s318]
                  %454 = vst [vmem:[%s326 + $0xfc] sm:%s318] %v453
                $region67: #{transition_forward.3} parent=54 // loop_footer
                  %s324 = sadd.s32 1, %s320
                $region68: #{transition_forward.3} parent=54 // loop_footer_branch
                  %319 = sbr.rel target = $region64
                $region69: #{transition_forward.3} parent=54 // loop_exit
                  _
              $region55: #{transition_forward.3} parent=39 // pred_fallthru
                _
            $region40: #{transition_forward.3} parent=35 // pred_fallthru
              _
            // Predicated region
            $region41: #{transition_forward.3} parent=35 // pred_check
              _
            $region42: #{transition_forward.3} parent=35 // pred_check_branch
              %168 = sbr.rel (0) target = $region44
            $region43: #{transition_forward.3} parent=35 // pred_region
              %s170 = ssub.s32 16, 1
              loop: start=0, step=1, limit=1
              $region45: #{transition_forward.3} parent=43 // loop_pre_header
                _
              $region46: #{transition_forward.3} parent=43 // loop_header
                %s172 = sphi 0, %s176
                %p173 = scmp.ge.s32.totalorder %s172, 1
                %s177 = sphi %s162, %s162
                %s178 = sphi %s159, %s159
              $region47: #{transition_forward.3} parent=43 // loop_header_branch
                %175 = sbr.rel (%p173) target = $region51
              $region48: #{transition_forward.3} parent=43 // loop_body
                %v179 = vld [vmem:[%s177] sm:%s170]
                %180 = vst [vmem:[%s178] sm:%s170] %v179
                %v181 = vld [vmem:[%s177 + $0x4] sm:%s170]
                %182 = vst [vmem:[%s178 + $0x4] sm:%s170] %v181
                %v183 = vld [vmem:[%s177 + $0x8] sm:%s170]
                %184 = vst [vmem:[%s178 + $0x8] sm:%s170] %v183
                %v185 = vld [vmem:[%s177 + $0xc] sm:%s170]
                %186 = vst [vmem:[%s178 + $0xc] sm:%s170] %v185
                %v187 = vld [vmem:[%s177 + $0x10] sm:%s170]
                %188 = vst [vmem:[%s178 + $0x10] sm:%s170] %v187
                %v189 = vld [vmem:[%s177 + $0x14] sm:%s170]
                %190 = vst [vmem:[%s178 + $0x14] sm:%s170] %v189
                %v191 = vld [vmem:[%s177 + $0x18] sm:%s170]
                %192 = vst [vmem:[%s178 + $0x18] sm:%s170] %v191
                %v193 = vld [vmem:[%s177 + $0x1c] sm:%s170]
                %194 = vst [vmem:[%s178 + $0x1c] sm:%s170] %v193
                %v195 = vld [vmem:[%s177 + $0x20] sm:%s170]
                %196 = vst [vmem:[%s178 + $0x20] sm:%s170] %v195
                %v197 = vld [vmem:[%s177 + $0x24] sm:%s170]
                %198 = vst [vmem:[%s178 + $0x24] sm:%s170] %v197
                %v199 = vld [vmem:[%s177 + $0x28] sm:%s170]
                %200 = vst [vmem:[%s178 + $0x28] sm:%s170] %v199
                %v201 = vld [vmem:[%s177 + $0x2c] sm:%s170]
                %202 = vst [vmem:[%s178 + $0x2c] sm:%s170] %v201
                %v203 = vld [vmem:[%s177 + $0x30] sm:%s170]
                %204 = vst [vmem:[%s178 + $0x30] sm:%s170] %v203
                %v205 = vld [vmem:[%s177 + $0x34] sm:%s170]
                %206 = vst [vmem:[%s178 + $0x34] sm:%s170] %v205
                %v207 = vld [vmem:[%s177 + $0x38] sm:%s170]
                %208 = vst [vmem:[%s178 + $0x38] sm:%s170] %v207
                %v209 = vld [vmem:[%s177 + $0x3c] sm:%s170]
                %210 = vst [vmem:[%s178 + $0x3c] sm:%s170] %v209
                %v211 = vld [vmem:[%s177 + $0x200] sm:%s170]
                %212 = vst [vmem:[%s178 + $0x40] sm:%s170] %v211
                %v213 = vld [vmem:[%s177 + $0x204] sm:%s170]
                %214 = vst [vmem:[%s178 + $0x44] sm:%s170] %v213
                %v215 = vld [vmem:[%s177 + $0x208] sm:%s170]
                %216 = vst [vmem:[%s178 + $0x48] sm:%s170] %v215
                %v217 = vld [vmem:[%s177 + $0x20c] sm:%s170]
                %218 = vst [vmem:[%s178 + $0x4c] sm:%s170] %v217
                %v219 = vld [vmem:[%s177 + $0x210] sm:%s170]
                %220 = vst [vmem:[%s178 + $0x50] sm:%s170] %v219
                %v221 = vld [vmem:[%s177 + $0x214] sm:%s170]
                %222 = vst [vmem:[%s178 + $0x54] sm:%s170] %v221
                %v223 = vld [vmem:[%s177 + $0x218] sm:%s170]
                %224 = vst [vmem:[%s178 + $0x58] sm:%s170] %v223
                %v225 = vld [vmem:[%s177 + $0x21c] sm:%s170]
                %226 = vst [vmem:[%s178 + $0x5c] sm:%s170] %v225
                %v227 = vld [vmem:[%s177 + $0x220] sm:%s170]
                %228 = vst [vmem:[%s178 + $0x60] sm:%s170] %v227
                %v229 = vld [vmem:[%s177 + $0x224] sm:%s170]
                %230 = vst [vmem:[%s178 + $0x64] sm:%s170] %v229
                %v231 = vld [vmem:[%s177 + $0x228] sm:%s170]
                %232 = vst [vmem:[%s178 + $0x68] sm:%s170] %v231
                %v233 = vld [vmem:[%s177 + $0x22c] sm:%s170]
                %234 = vst [vmem:[%s178 + $0x6c] sm:%s170] %v233
                %v235 = vld [vmem:[%s177 + $0x230] sm:%s170]
                %236 = vst [vmem:[%s178 + $0x70] sm:%s170] %v235
                %v237 = vld [vmem:[%s177 + $0x234] sm:%s170]
                %238 = vst [vmem:[%s178 + $0x74] sm:%s170] %v237
                %v239 = vld [vmem:[%s177 + $0x238] sm:%s170]
                %240 = vst [vmem:[%s178 + $0x78] sm:%s170] %v239
                %v241 = vld [vmem:[%s177 + $0x23c] sm:%s170]
                %242 = vst [vmem:[%s178 + $0x7c] sm:%s170] %v241
                %v243 = vld [vmem:[%s177 + $0x400] sm:%s170]
                %244 = vst [vmem:[%s178 + $0x80] sm:%s170] %v243
                %v245 = vld [vmem:[%s177 + $0x404] sm:%s170]
                %246 = vst [vmem:[%s178 + $0x84] sm:%s170] %v245
                %v247 = vld [vmem:[%s177 + $0x408] sm:%s170]
                %248 = vst [vmem:[%s178 + $0x88] sm:%s170] %v247
                %v249 = vld [vmem:[%s177 + $0x40c] sm:%s170]
                %250 = vst [vmem:[%s178 + $0x8c] sm:%s170] %v249
                %v251 = vld [vmem:[%s177 + $0x410] sm:%s170]
                %252 = vst [vmem:[%s178 + $0x90] sm:%s170] %v251
                %v253 = vld [vmem:[%s177 + $0x414] sm:%s170]
                %254 = vst [vmem:[%s178 + $0x94] sm:%s170] %v253
                %v255 = vld [vmem:[%s177 + $0x418] sm:%s170]
                %256 = vst [vmem:[%s178 + $0x98] sm:%s170] %v255
                %v257 = vld [vmem:[%s177 + $0x41c] sm:%s170]
                %258 = vst [vmem:[%s178 + $0x9c] sm:%s170] %v257
                %v259 = vld [vmem:[%s177 + $0x420] sm:%s170]
                %260 = vst [vmem:[%s178 + $0xa0] sm:%s170] %v259
                %v261 = vld [vmem:[%s177 + $0x424] sm:%s170]
                %262 = vst [vmem:[%s178 + $0xa4] sm:%s170] %v261
                %v263 = vld [vmem:[%s177 + $0x428] sm:%s170]
                %264 = vst [vmem:[%s178 + $0xa8] sm:%s170] %v263
                %v265 = vld [vmem:[%s177 + $0x42c] sm:%s170]
                %266 = vst [vmem:[%s178 + $0xac] sm:%s170] %v265
                %v267 = vld [vmem:[%s177 + $0x430] sm:%s170]
                %268 = vst [vmem:[%s178 + $0xb0] sm:%s170] %v267
                %v269 = vld [vmem:[%s177 + $0x434] sm:%s170]
                %270 = vst [vmem:[%s178 + $0xb4] sm:%s170] %v269
                %v271 = vld [vmem:[%s177 + $0x438] sm:%s170]
                %272 = vst [vmem:[%s178 + $0xb8] sm:%s170] %v271
                %v273 = vld [vmem:[%s177 + $0x43c] sm:%s170]
                %274 = vst [vmem:[%s178 + $0xbc] sm:%s170] %v273
                %v275 = vld [vmem:[%s177 + $0x600] sm:%s170]
                %276 = vst [vmem:[%s178 + $0xc0] sm:%s170] %v275
                %v277 = vld [vmem:[%s177 + $0x604] sm:%s170]
                %278 = vst [vmem:[%s178 + $0xc4] sm:%s170] %v277
                %v279 = vld [vmem:[%s177 + $0x608] sm:%s170]
                %280 = vst [vmem:[%s178 + $0xc8] sm:%s170] %v279
                %v281 = vld [vmem:[%s177 + $0x60c] sm:%s170]
                %282 = vst [vmem:[%s178 + $0xcc] sm:%s170] %v281
                %v283 = vld [vmem:[%s177 + $0x610] sm:%s170]
                %284 = vst [vmem:[%s178 + $0xd0] sm:%s170] %v283
                %v285 = vld [vmem:[%s177 + $0x614] sm:%s170]
                %286 = vst [vmem:[%s178 + $0xd4] sm:%s170] %v285
                %v287 = vld [vmem:[%s177 + $0x618] sm:%s170]
                %288 = vst [vmem:[%s178 + $0xd8] sm:%s170] %v287
                %v289 = vld [vmem:[%s177 + $0x61c] sm:%s170]
                %290 = vst [vmem:[%s178 + $0xdc] sm:%s170] %v289
                %v291 = vld [vmem:[%s177 + $0x620] sm:%s170]
                %292 = vst [vmem:[%s178 + $0xe0] sm:%s170] %v291
                %v293 = vld [vmem:[%s177 + $0x624] sm:%s170]
                %294 = vst [vmem:[%s178 + $0xe4] sm:%s170] %v293
                %v295 = vld [vmem:[%s177 + $0x628] sm:%s170]
                %296 = vst [vmem:[%s178 + $0xe8] sm:%s170] %v295
                %v297 = vld [vmem:[%s177 + $0x62c] sm:%s170]
                %298 = vst [vmem:[%s178 + $0xec] sm:%s170] %v297
                %v299 = vld [vmem:[%s177 + $0x630] sm:%s170]
                %300 = vst [vmem:[%s178 + $0xf0] sm:%s170] %v299
                %v301 = vld [vmem:[%s177 + $0x634] sm:%s170]
                %302 = vst [vmem:[%s178 + $0xf4] sm:%s170] %v301
                %v303 = vld [vmem:[%s177 + $0x638] sm:%s170]
                %304 = vst [vmem:[%s178 + $0xf8] sm:%s170] %v303
                %v305 = vld [vmem:[%s177 + $0x63c] sm:%s170]
                %306 = vst [vmem:[%s178 + $0xfc] sm:%s170] %v305
              $region49: #{transition_forward.3} parent=43 // loop_footer
                %s176 = sadd.s32 1, %s172
              $region50: #{transition_forward.3} parent=43 // loop_footer_branch
                %171 = sbr.rel target = $region46
              $region51: #{transition_forward.3} parent=43 // loop_exit
                _
            $region44: #{transition_forward.3} parent=35 // pred_fallthru
              _
          $region36: #{transition_forward.3} parent=31 // pred_fallthru
            _
          %455 = vnop
        $region32: #{transition_forward.3} parent=27 // pred_fallthru
          _
      $region28: #{transition_forward.3} parent=5 // pred_fallthru
        _
      %p456 = scmp.le.s32.totalorder 1, %s10
      %p457 = scmp.lt.s32.totalorder %s10, 9
      %p458 = pnand %p456, %p457
      %p459 = pneg %p458
      // Predicated region
      $region70: #{transition_forward.3} parent=5 // pred_check
        _
      $region71: #{transition_forward.3} parent=5 // pred_check_branch
        %461 = sbr.rel (%p458) target = $region73
      $region72: #{transition_forward.3} parent=5 // pred_region
        %s462 = ssub.s32 %s10, 1
        %s463 = sand.u32 %s23, 1
        %s464 = sand.u32 %s23, 1
        %s465 = smul.addr %s464, 256
        %s466 = scalar_lea.vmem [#allocation2], %s465
        // Predicated region
        $region74: #{transition_forward.3} parent=72 // pred_check
          %p467 = pneg %p36
        $region75: #{transition_forward.3} parent=72 // pred_check_branch
          %469 = sbr.rel (%p467) target = $region77
        $region76: #{transition_forward.3} parent=72 // pred_region
          _
        $region77: #{transition_forward.3} parent=72 // pred_fallthru
          _
        %s470 = sand.u32 %s23, 1
        %s471 = sand.u32 %s23, 1
        %s472 = smul.addr %s471, 256
        %s473 = scalar_lea.vmem [#allocation2], %s472
        %p474 = pneg %p36
        %p475 = pneg %p33
        %p476 = pneg %p57
        %p477 = pneg %p54
        %p478 = pneg %p78
        %p479 = pneg %p75
        %p480 = pneg %p99
        %p481 = pneg %p96
        %p482 = pneg %p125
        %p483 = pneg %p122
        %s484 = smul.u32 16, %s15
        %p485 = scmp.lt.s32.totalorder %s484, 127
        %s486 = scalar_select %p485, %s484, 127
        %s487 = smul.addr %s486, 4
        %s488 = scalar_lea.vmem %s4, %s487
        %s489 = smul.u32 16, %s15
        %s490 = smul.u32 16, %s15
        %p491 = scmp.lt.s32.totalorder %s490, 127
        %s492 = scalar_select %p491, %s490, 127
        %s493 = smul.addr %s492, 4
        %s494 = scalar_lea.vmem %s4, %s493
        %s495 = smul.u32 16, %s15
        %v497 = vld [vmem:[%s466] sm:$0xf]
        %v498 = vld [vmem:[%s466 + $0x4] sm:$0xf]
        %v499 = vld [vmem:[%s466 + $0x8] sm:$0xf]
        %v500 = vld [vmem:[%s466 + $0xc] sm:$0xf]
        %v501 = vld [vmem:[%s466 + $0x10] sm:$0xf]
        %v502 = vld [vmem:[%s466 + $0x14] sm:$0xf]
        %v503 = vld [vmem:[%s466 + $0x18] sm:$0xf]
        %v504 = vld [vmem:[%s466 + $0x1c] sm:$0xf]
        %v505 = vld [vmem:[%s466 + $0x20] sm:$0xf]
        %v506 = vld [vmem:[%s466 + $0x24] sm:$0xf]
        %v507 = vld [vmem:[%s466 + $0x28] sm:$0xf]
        %v508 = vld [vmem:[%s466 + $0x2c] sm:$0xf]
        %v509 = vld [vmem:[%s466 + $0x30] sm:$0xf]
        %v510 = vld [vmem:[%s466 + $0x34] sm:$0xf]
        %v511 = vld [vmem:[%s466 + $0x38] sm:$0xf]
        %v512 = vld [vmem:[%s466 + $0x3c] sm:$0xf]
        %v513 = vld [vmem:[%s466 + $0x40] sm:$0xf]
        %v514 = vld [vmem:[%s466 + $0x44] sm:$0xf]
        %v515 = vld [vmem:[%s466 + $0x48] sm:$0xf]
        %v516 = vld [vmem:[%s466 + $0x4c] sm:$0xf]
        %v517 = vld [vmem:[%s466 + $0x50] sm:$0xf]
        %v518 = vld [vmem:[%s466 + $0x54] sm:$0xf]
        %v519 = vld [vmem:[%s466 + $0x58] sm:$0xf]
        %v520 = vld [vmem:[%s466 + $0x5c] sm:$0xf]
        %v521 = vld [vmem:[%s466 + $0x60] sm:$0xf]
        %v522 = vld [vmem:[%s466 + $0x64] sm:$0xf]
        %v523 = vld [vmem:[%s466 + $0x68] sm:$0xf]
        %v524 = vld [vmem:[%s466 + $0x6c] sm:$0xf]
        %v525 = vld [vmem:[%s466 + $0x70] sm:$0xf]
        %v526 = vld [vmem:[%s466 + $0x74] sm:$0xf]
        %v527 = vld [vmem:[%s466 + $0x78] sm:$0xf]
        %v528 = vld [vmem:[%s466 + $0x7c] sm:$0xf]
        %v529 = vld [vmem:[%s466 + $0x80] sm:$0xf]
        %v530 = vld [vmem:[%s466 + $0x84] sm:$0xf]
        %v531 = vld [vmem:[%s466 + $0x88] sm:$0xf]
        %v532 = vld [vmem:[%s466 + $0x8c] sm:$0xf]
        %v533 = vld [vmem:[%s466 + $0x90] sm:$0xf]
        %v534 = vld [vmem:[%s466 + $0x94] sm:$0xf]
        %v535 = vld [vmem:[%s466 + $0x98] sm:$0xf]
        %v536 = vld [vmem:[%s466 + $0x9c] sm:$0xf]
        %v537 = vld [vmem:[%s466 + $0xa0] sm:$0xf]
        %v538 = vld [vmem:[%s466 + $0xa4] sm:$0xf]
        %v539 = vld [vmem:[%s466 + $0xa8] sm:$0xf]
        %v540 = vld [vmem:[%s466 + $0xac] sm:$0xf]
        %v541 = vld [vmem:[%s466 + $0xb0] sm:$0xf]
        %v542 = vld [vmem:[%s466 + $0xb4] sm:$0xf]
        %v543 = vld [vmem:[%s466 + $0xb8] sm:$0xf]
        %v544 = vld [vmem:[%s466 + $0xbc] sm:$0xf]
        %v545 = vld [vmem:[%s466 + $0xc0] sm:$0xf]
        %v546 = vld [vmem:[%s466 + $0xc4] sm:$0xf]
        %v547 = vld [vmem:[%s466 + $0xc8] sm:$0xf]
        %v548 = vld [vmem:[%s466 + $0xcc] sm:$0xf]
        %v549 = vld [vmem:[%s466 + $0xd0] sm:$0xf]
        %v550 = vld [vmem:[%s466 + $0xd4] sm:$0xf]
        %v551 = vld [vmem:[%s466 + $0xd8] sm:$0xf]
        %v552 = vld [vmem:[%s466 + $0xdc] sm:$0xf]
        %v553 = vld [vmem:[%s466 + $0xe0] sm:$0xf]
        %v554 = vld [vmem:[%s466 + $0xe4] sm:$0xf]
        %v555 = vld [vmem:[%s466 + $0xe8] sm:$0xf]
        %v556 = vld [vmem:[%s466 + $0xec] sm:$0xf]
        %v557 = vld [vmem:[%s466 + $0xf0] sm:$0xf]
        %v558 = vld [vmem:[%s466 + $0xf4] sm:$0xf]
        %v559 = vld [vmem:[%s466 + $0xf8] sm:$0xf]
        %v560 = vld [vmem:[%s466 + $0xfc] sm:$0xf]
        %v561 = vunpack.c.l.bf16 %v497
        %v562 = vunpack.c.l.bf16 %v498
        %v563 = vunpack.c.l.bf16 %v499
        %v564 = vunpack.c.l.bf16 %v500
        %v565 = vunpack.c.l.bf16 %v501
        %v566 = vunpack.c.l.bf16 %v502
        %v567 = vunpack.c.l.bf16 %v503
        %v568 = vunpack.c.l.bf16 %v504
        %v569 = vunpack.c.l.bf16 %v505
        %v570 = vunpack.c.l.bf16 %v506
        %v571 = vunpack.c.l.bf16 %v507
        %v572 = vunpack.c.l.bf16 %v508
        %v573 = vunpack.c.l.bf16 %v509
        %v574 = vunpack.c.l.bf16 %v510
        %v575 = vunpack.c.l.bf16 %v511
        %v576 = vunpack.c.l.bf16 %v512
        %v577 = vunpack.c.l.bf16 %v513
        %v578 = vunpack.c.l.bf16 %v514
        %v579 = vunpack.c.l.bf16 %v515
        %v580 = vunpack.c.l.bf16 %v516
        %v581 = vunpack.c.l.bf16 %v517
        %v582 = vunpack.c.l.bf16 %v518
        %v583 = vunpack.c.l.bf16 %v519
        %v584 = vunpack.c.l.bf16 %v520
        %v585 = vunpack.c.l.bf16 %v521
        %v586 = vunpack.c.l.bf16 %v522
        %v587 = vunpack.c.l.bf16 %v523
        %v588 = vunpack.c.l.bf16 %v524
        %v589 = vunpack.c.l.bf16 %v525
        %v590 = vunpack.c.l.bf16 %v526
        %v591 = vunpack.c.l.bf16 %v527
        %v592 = vunpack.c.l.bf16 %v528
        %v593 = vunpack.c.l.bf16 %v529
        %v594 = vunpack.c.l.bf16 %v530
        %v595 = vunpack.c.l.bf16 %v531
        %v596 = vunpack.c.l.bf16 %v532
        %v597 = vunpack.c.l.bf16 %v533
        %v598 = vunpack.c.l.bf16 %v534
        %v599 = vunpack.c.l.bf16 %v535
        %v600 = vunpack.c.l.bf16 %v536
        %v601 = vunpack.c.l.bf16 %v537
        %v602 = vunpack.c.l.bf16 %v538
        %v603 = vunpack.c.l.bf16 %v539
        %v604 = vunpack.c.l.bf16 %v540
        %v605 = vunpack.c.l.bf16 %v541
        %v606 = vunpack.c.l.bf16 %v542
        %v607 = vunpack.c.l.bf16 %v543
        %v608 = vunpack.c.l.bf16 %v544
        %v609 = vunpack.c.l.bf16 %v545
        %v610 = vunpack.c.l.bf16 %v546
        %v611 = vunpack.c.l.bf16 %v547
        %v612 = vunpack.c.l.bf16 %v548
        %v613 = vunpack.c.l.bf16 %v549
        %v614 = vunpack.c.l.bf16 %v550
        %v615 = vunpack.c.l.bf16 %v551
        %v616 = vunpack.c.l.bf16 %v552
        %v617 = vunpack.c.l.bf16 %v553
        %v618 = vunpack.c.l.bf16 %v554
        %v619 = vunpack.c.l.bf16 %v555
        %v620 = vunpack.c.l.bf16 %v556
        %v621 = vunpack.c.l.bf16 %v557
        %v622 = vunpack.c.l.bf16 %v558
        %v623 = vunpack.c.l.bf16 %v559
        %v624 = vunpack.c.l.bf16 %v560
        %v625 = vld [vmem:[%s1] sm:$0x1]
        %v627 = vperm.slane %v625, 0
        %v629 = vmul.f32 %v561, %v627
        %v630 = vmul.f32 %v562, %v627
        %v631 = vmul.f32 %v563, %v627
        %v632 = vmul.f32 %v564, %v627
        %v633 = vmul.f32 %v565, %v627
        %v634 = vmul.f32 %v566, %v627
        %v635 = vmul.f32 %v567, %v627
        %v636 = vmul.f32 %v568, %v627
        %v637 = vmul.f32 %v569, %v627
        %v638 = vmul.f32 %v570, %v627
        %v639 = vmul.f32 %v571, %v627
        %v640 = vmul.f32 %v572, %v627
        %v641 = vmul.f32 %v573, %v627
        %v642 = vmul.f32 %v574, %v627
        %v643 = vmul.f32 %v575, %v627
        %v644 = vmul.f32 %v576, %v627
        %v645 = vmul.f32 %v577, %v627
        %v646 = vmul.f32 %v578, %v627
        %v647 = vmul.f32 %v579, %v627
        %v648 = vmul.f32 %v580, %v627
        %v649 = vmul.f32 %v581, %v627
        %v650 = vmul.f32 %v582, %v627
        %v651 = vmul.f32 %v583, %v627
        %v652 = vmul.f32 %v584, %v627
        %v653 = vmul.f32 %v585, %v627
        %v654 = vmul.f32 %v586, %v627
        %v655 = vmul.f32 %v587, %v627
        %v656 = vmul.f32 %v588, %v627
        %v657 = vmul.f32 %v589, %v627
        %v658 = vmul.f32 %v590, %v627
        %v659 = vmul.f32 %v591, %v627
        %v660 = vmul.f32 %v592, %v627
        %v661 = vmul.f32 %v593, %v627
        %v662 = vmul.f32 %v594, %v627
        %v663 = vmul.f32 %v595, %v627
        %v664 = vmul.f32 %v596, %v627
        %v665 = vmul.f32 %v597, %v627
        %v666 = vmul.f32 %v598, %v627
        %v667 = vmul.f32 %v599, %v627
        %v668 = vmul.f32 %v600, %v627
        %v669 = vmul.f32 %v601, %v627
        %v670 = vmul.f32 %v602, %v627
        %v671 = vmul.f32 %v603, %v627
        %v672 = vmul.f32 %v604, %v627
        %v673 = vmul.f32 %v605, %v627
        %v674 = vmul.f32 %v606, %v627
        %v675 = vmul.f32 %v607, %v627
        %v676 = vmul.f32 %v608, %v627
        %v677 = vmul.f32 %v609, %v627
        %v678 = vmul.f32 %v610, %v627
        %v679 = vmul.f32 %v611, %v627
        %v680 = vmul.f32 %v612, %v627
        %v681 = vmul.f32 %v613, %v627
        %v682 = vmul.f32 %v614, %v627
        %v683 = vmul.f32 %v615, %v627
        %v684 = vmul.f32 %v616, %v627
        %v685 = vmul.f32 %v617, %v627
        %v686 = vmul.f32 %v618, %v627
        %v687 = vmul.f32 %v619, %v627
        %v688 = vmul.f32 %v620, %v627
        %v689 = vmul.f32 %v621, %v627
        %v690 = vmul.f32 %v622, %v627
        %v691 = vmul.f32 %v623, %v627
        %v692 = vmul.f32 %v624, %v627
        %v693 = vld [vmem:[%s2] sm:$0x1]
        %v695 = vperm.slane %v693, 0
        %v697 = vadd.f32 %v629, %v695
        %v698 = vadd.f32 %v630, %v695
        %v699 = vadd.f32 %v631, %v695
        %v700 = vadd.f32 %v632, %v695
        %v701 = vadd.f32 %v633, %v695
        %v702 = vadd.f32 %v634, %v695
        %v703 = vadd.f32 %v635, %v695
        %v704 = vadd.f32 %v636, %v695
        %v705 = vadd.f32 %v637, %v695
        %v706 = vadd.f32 %v638, %v695
        %v707 = vadd.f32 %v639, %v695
        %v708 = vadd.f32 %v640, %v695
        %v709 = vadd.f32 %v641, %v695
        %v710 = vadd.f32 %v642, %v695
        %v711 = vadd.f32 %v643, %v695
        %v712 = vadd.f32 %v644, %v695
        %v713 = vadd.f32 %v645, %v695
        %v714 = vadd.f32 %v646, %v695
        %v715 = vadd.f32 %v647, %v695
        %v716 = vadd.f32 %v648, %v695
        %v717 = vadd.f32 %v649, %v695
        %v718 = vadd.f32 %v650, %v695
        %v719 = vadd.f32 %v651, %v695
        %v720 = vadd.f32 %v652, %v695
        %v721 = vadd.f32 %v653, %v695
        %v722 = vadd.f32 %v654, %v695
        %v723 = vadd.f32 %v655, %v695
        %v724 = vadd.f32 %v656, %v695
        %v725 = vadd.f32 %v657, %v695
        %v726 = vadd.f32 %v658, %v695
        %v727 = vadd.f32 %v659, %v695
        %v728 = vadd.f32 %v660, %v695
        %v729 = vadd.f32 %v661, %v695
        %v730 = vadd.f32 %v662, %v695
        %v731 = vadd.f32 %v663, %v695
        %v732 = vadd.f32 %v664, %v695
        %v733 = vadd.f32 %v665, %v695
        %v734 = vadd.f32 %v666, %v695
        %v735 = vadd.f32 %v667, %v695
        %v736 = vadd.f32 %v668, %v695
        %v737 = vadd.f32 %v669, %v695
        %v738 = vadd.f32 %v670, %v695
        %v739 = vadd.f32 %v671, %v695
        %v740 = vadd.f32 %v672, %v695
        %v741 = vadd.f32 %v673, %v695
        %v742 = vadd.f32 %v674, %v695
        %v743 = vadd.f32 %v675, %v695
        %v744 = vadd.f32 %v676, %v695
        %v745 = vadd.f32 %v677, %v695
        %v746 = vadd.f32 %v678, %v695
        %v747 = vadd.f32 %v679, %v695
        %v748 = vadd.f32 %v680, %v695
        %v749 = vadd.f32 %v681, %v695
        %v750 = vadd.f32 %v682, %v695
        %v751 = vadd.f32 %v683, %v695
        %v752 = vadd.f32 %v684, %v695
        %v753 = vadd.f32 %v685, %v695
        %v754 = vadd.f32 %v686, %v695
        %v755 = vadd.f32 %v687, %v695
        %v756 = vadd.f32 %v688, %v695
        %v757 = vadd.f32 %v689, %v695
        %v758 = vadd.f32 %v690, %v695
        %v759 = vadd.f32 %v691, %v695
        %v760 = vadd.f32 %v692, %v695
        %v761 = vmax.f32 %v697, 0.0
        %v762 = vmax.f32 %v698, 0.0
        %v763 = vmax.f32 %v699, 0.0
        %v764 = vmax.f32 %v700, 0.0
        %v765 = vmax.f32 %v701, 0.0
        %v766 = vmax.f32 %v702, 0.0
        %v767 = vmax.f32 %v703, 0.0
        %v768 = vmax.f32 %v704, 0.0
        %v769 = vmax.f32 %v705, 0.0
        %v770 = vmax.f32 %v706, 0.0
        %v771 = vmax.f32 %v707, 0.0
        %v772 = vmax.f32 %v708, 0.0
        %v773 = vmax.f32 %v709, 0.0
        %v774 = vmax.f32 %v710, 0.0
        %v775 = vmax.f32 %v711, 0.0
        %v776 = vmax.f32 %v712, 0.0
        %v777 = vmax.f32 %v713, 0.0
        %v778 = vmax.f32 %v714, 0.0
        %v779 = vmax.f32 %v715, 0.0
        %v780 = vmax.f32 %v716, 0.0
        %v781 = vmax.f32 %v717, 0.0
        %v782 = vmax.f32 %v718, 0.0
        %v783 = vmax.f32 %v719, 0.0
        %v784 = vmax.f32 %v720, 0.0
        %v785 = vmax.f32 %v721, 0.0
        %v786 = vmax.f32 %v722, 0.0
        %v787 = vmax.f32 %v723, 0.0
        %v788 = vmax.f32 %v724, 0.0
        %v789 = vmax.f32 %v725, 0.0
        %v790 = vmax.f32 %v726, 0.0
        %v791 = vmax.f32 %v727, 0.0
        %v792 = vmax.f32 %v728, 0.0
        %v793 = vmax.f32 %v729, 0.0
        %v794 = vmax.f32 %v730, 0.0
        %v795 = vmax.f32 %v731, 0.0
        %v796 = vmax.f32 %v732, 0.0
        %v797 = vmax.f32 %v733, 0.0
        %v798 = vmax.f32 %v734, 0.0
        %v799 = vmax.f32 %v735, 0.0
        %v800 = vmax.f32 %v736, 0.0
        %v801 = vmax.f32 %v737, 0.0
        %v802 = vmax.f32 %v738, 0.0
        %v803 = vmax.f32 %v739, 0.0
        %v804 = vmax.f32 %v740, 0.0
        %v805 = vmax.f32 %v741, 0.0
        %v806 = vmax.f32 %v742, 0.0
        %v807 = vmax.f32 %v743, 0.0
        %v808 = vmax.f32 %v744, 0.0
        %v809 = vmax.f32 %v745, 0.0
        %v810 = vmax.f32 %v746, 0.0
        %v811 = vmax.f32 %v747, 0.0
        %v812 = vmax.f32 %v748, 0.0
        %v813 = vmax.f32 %v749, 0.0
        %v814 = vmax.f32 %v750, 0.0
        %v815 = vmax.f32 %v751, 0.0
        %v816 = vmax.f32 %v752, 0.0
        %v817 = vmax.f32 %v753, 0.0
        %v818 = vmax.f32 %v754, 0.0
        %v819 = vmax.f32 %v755, 0.0
        %v820 = vmax.f32 %v756, 0.0
        %v821 = vmax.f32 %v757, 0.0
        %v822 = vmax.f32 %v758, 0.0
        %v823 = vmax.f32 %v759, 0.0
        %v824 = vmax.f32 %v760, 0.0
        %vm825 = vcmask 523264
        %v826 = vsel %vm825, %v761, 0.0
        %v827 = vsel %vm825, %v777, 0.0
        %v828 = vadd.f32 %v826, %v827
        %v829 = vsel %vm825, %v793, 0.0
        %v830 = vadd.f32 %v828, %v829
        %v831 = vsel %vm825, %v809, 0.0
        %v832 = vadd.f32 %v830, %v831
        %v833 = vsel %vm825, %v762, 0.0
        %v834 = vsel %vm825, %v778, 0.0
        %v835 = vadd.f32 %v833, %v834
        %v836 = vsel %vm825, %v794, 0.0
        %v837 = vadd.f32 %v835, %v836
        %v838 = vsel %vm825, %v810, 0.0
        %v839 = vadd.f32 %v837, %v838
        %v840 = vsel %vm825, %v763, 0.0
        %v841 = vsel %vm825, %v779, 0.0
        %v842 = vadd.f32 %v840, %v841
        %v843 = vsel %vm825, %v795, 0.0
        %v844 = vadd.f32 %v842, %v843
        %v845 = vsel %vm825, %v811, 0.0
        %v846 = vadd.f32 %v844, %v845
        %v847 = vsel %vm825, %v764, 0.0
        %v848 = vsel %vm825, %v780, 0.0
        %v849 = vadd.f32 %v847, %v848
        %v850 = vsel %vm825, %v796, 0.0
        %v851 = vadd.f32 %v849, %v850
        %v852 = vsel %vm825, %v812, 0.0
        %v853 = vadd.f32 %v851, %v852
        %v854 = vsel %vm825, %v765, 0.0
        %v855 = vsel %vm825, %v781, 0.0
        %v856 = vadd.f32 %v854, %v855
        %v857 = vsel %vm825, %v797, 0.0
        %v858 = vadd.f32 %v856, %v857
        %v859 = vsel %vm825, %v813, 0.0
        %v860 = vadd.f32 %v858, %v859
        %v861 = vsel %vm825, %v766, 0.0
        %v862 = vsel %vm825, %v782, 0.0
        %v863 = vadd.f32 %v861, %v862
        %v864 = vsel %vm825, %v798, 0.0
        %v865 = vadd.f32 %v863, %v864
        %v866 = vsel %vm825, %v814, 0.0
        %v867 = vadd.f32 %v865, %v866
        %v868 = vsel %vm825, %v767, 0.0
        %v869 = vsel %vm825, %v783, 0.0
        %v870 = vadd.f32 %v868, %v869
        %v871 = vsel %vm825, %v799, 0.0
        %v872 = vadd.f32 %v870, %v871
        %v873 = vsel %vm825, %v815, 0.0
        %v874 = vadd.f32 %v872, %v873
        %v875 = vsel %vm825, %v768, 0.0
        %v876 = vsel %vm825, %v784, 0.0
        %v877 = vadd.f32 %v875, %v876
        %v878 = vsel %vm825, %v800, 0.0
        %v879 = vadd.f32 %v877, %v878
        %v880 = vsel %vm825, %v816, 0.0
        %v881 = vadd.f32 %v879, %v880
        %v882 = vsel %vm825, %v769, 0.0
        %v883 = vsel %vm825, %v785, 0.0
        %v884 = vadd.f32 %v882, %v883
        %v885 = vsel %vm825, %v801, 0.0
        %v886 = vadd.f32 %v884, %v885
        %v887 = vsel %vm825, %v817, 0.0
        %v888 = vadd.f32 %v886, %v887
        %v889 = vsel %vm825, %v770, 0.0
        %v890 = vsel %vm825, %v786, 0.0
        %v891 = vadd.f32 %v889, %v890
        %v892 = vsel %vm825, %v802, 0.0
        %v893 = vadd.f32 %v891, %v892
        %v894 = vsel %vm825, %v818, 0.0
        %v895 = vadd.f32 %v893, %v894
        %v896 = vsel %vm825, %v771, 0.0
        %v897 = vsel %vm825, %v787, 0.0
        %v898 = vadd.f32 %v896, %v897
        %v899 = vsel %vm825, %v803, 0.0
        %v900 = vadd.f32 %v898, %v899
        %v901 = vsel %vm825, %v819, 0.0
        %v902 = vadd.f32 %v900, %v901
        %v903 = vsel %vm825, %v772, 0.0
        %v904 = vsel %vm825, %v788, 0.0
        %v905 = vadd.f32 %v903, %v904
        %v906 = vsel %vm825, %v804, 0.0
        %v907 = vadd.f32 %v905, %v906
        %v908 = vsel %vm825, %v820, 0.0
        %v909 = vadd.f32 %v907, %v908
        %v910 = vsel %vm825, %v773, 0.0
        %v911 = vsel %vm825, %v789, 0.0
        %v912 = vadd.f32 %v910, %v911
        %v913 = vsel %vm825, %v805, 0.0
        %v914 = vadd.f32 %v912, %v913
        %v915 = vsel %vm825, %v821, 0.0
        %v916 = vadd.f32 %v914, %v915
        %v917 = vsel %vm825, %v774, 0.0
        %v918 = vsel %vm825, %v790, 0.0
        %v919 = vadd.f32 %v917, %v918
        %v920 = vsel %vm825, %v806, 0.0
        %v921 = vadd.f32 %v919, %v920
        %v922 = vsel %vm825, %v822, 0.0
        %v923 = vadd.f32 %v921, %v922
        %v924 = vsel %vm825, %v775, 0.0
        %v925 = vsel %vm825, %v791, 0.0
        %v926 = vadd.f32 %v924, %v925
        %v927 = vsel %vm825, %v807, 0.0
        %v928 = vadd.f32 %v926, %v927
        %v929 = vsel %vm825, %v823, 0.0
        %v930 = vadd.f32 %v928, %v929
        %v931 = vsel %vm825, %v776, 0.0
        %v932 = vsel %vm825, %v792, 0.0
        %v933 = vadd.f32 %v931, %v932
        %v934 = vsel %vm825, %v808, 0.0
        %v935 = vadd.f32 %v933, %v934
        %v936 = vsel %vm825, %v824, 0.0
        %v937 = vadd.f32 %v935, %v936
        %v938 = vmul.f32 %v832, 0.25
        %v939 = vmul.f32 %v839, 0.25
        %v940 = vmul.f32 %v846, 0.25
        %v941 = vmul.f32 %v853, 0.25
        %v942 = vmul.f32 %v860, 0.25
        %v943 = vmul.f32 %v867, 0.25
        %v944 = vmul.f32 %v874, 0.25
        %v945 = vmul.f32 %v881, 0.25
        %v946 = vmul.f32 %v888, 0.25
        %v947 = vmul.f32 %v895, 0.25
        %v948 = vmul.f32 %v902, 0.25
        %v949 = vmul.f32 %v909, 0.25
        %v950 = vmul.f32 %v916, 0.25
        %v951 = vmul.f32 %v923, 0.25
        %v952 = vmul.f32 %v930, 0.25
        %v953 = vmul.f32 %v937, 0.25
        %v954 = vpack.c.bf16 %v939, %v938
        %v955 = vpack.c.bf16 %v941, %v940
        %v956 = vpack.c.bf16 %v943, %v942
        %v957 = vpack.c.bf16 %v945, %v944
        %v958 = vpack.c.bf16 %v947, %v946
        %v959 = vpack.c.bf16 %v949, %v948
        %v960 = vpack.c.bf16 %v951, %v950
        %v961 = vpack.c.bf16 %v953, %v952
        %v962 = vld [vmem:[%s3] sm:$0xf]
        %v963 = vld [vmem:[%s3 + $0x4] sm:$0xf]
        %v964 = vld [vmem:[%s3 + $0x8] sm:$0xf]
        %v965 = vld [vmem:[%s3 + $0xc] sm:$0xf]
        %v966 = vld [vmem:[%s3 + $0x10] sm:$0xf]
        %v967 = vld [vmem:[%s3 + $0x14] sm:$0xf]
        %v968 = vld [vmem:[%s3 + $0x18] sm:$0xf]
        %v969 = vld [vmem:[%s3 + $0x1c] sm:$0xf]
        %v978 = vunpack.c.l.b16 %v962
        %v979 = vunpack.c.l.b16 %v963
        %v980 = vunpack.c.l.b16 %v964
        %v981 = vunpack.c.l.b16 %v965
        %v982 = vunpack.c.l.b16 %v966
        %v983 = vunpack.c.l.b16 %v967
        %v984 = vunpack.c.l.b16 %v968
        %v985 = vunpack.c.l.b16 %v969
        %v986 = vpack.c.b16 %v979, %v978
        %v987 = vpack.c.b16 %v981, %v980
        %v988 = vpack.c.b16 %v983, %v982
        %v989 = vpack.c.b16 %v985, %v984
        %v995 = vsel %vm825, %v954, 0
        %v998 = vsel %vm825, %v955, 0
        %v1001 = vsel %vm825, %v956, 0
        %v1004 = vsel %vm825, %v957, 0
        %v1007 = vsel %vm825, %v958, 0
        %v1010 = vsel %vm825, %v959, 0
        %v1013 = vsel %vm825, %v960, 0
        %v1016 = vsel %vm825, %v961, 0
        %1018 = vmatpush.bf16.msra.mxu0 0
        %1019 = vmatpush.bf16.msra.mxu0 0
        %1020 = vmatpush.bf16.msra.mxu0 0
        %1021 = vmatpush.bf16.msra.mxu0 0
        %1022 = vmatpush.bf16.msra.mxu0 %v989
        %1023 = vmatpush.bf16.msra.mxu0 %v988
        %1024 = vmatpush.bf16.msra.mxu0 %v987
        %1025 = vmatpush.bf16.msra.mxu0 %v986
        %1026 = vmatmul.bf16.gmra.mxu0 %v995
        %v1027 = vpop.f32.mrf.mxu0
        %v1028 = vadd.f32 0.0, %v1027
        %v1029 = vpop.f32.mrf.mxu0
        %v1030 = vadd.f32 0.0, %v1029
        %1031 = vmatmul.bf16.gmra.mxu0 %v998
        %v1032 = vpop.f32.mrf.mxu0
        %v1033 = vadd.f32 0.0, %v1032
        %v1034 = vpop.f32.mrf.mxu0
        %v1035 = vadd.f32 0.0, %v1034
        %1036 = vmatmul.bf16.gmra.mxu0 %v1001
        %v1037 = vpop.f32.mrf.mxu0
        %v1038 = vadd.f32 0.0, %v1037
        %v1039 = vpop.f32.mrf.mxu0
        %v1040 = vadd.f32 0.0, %v1039
        %1041 = vmatmul.bf16.gmra.mxu0 %v1004
        %v1042 = vpop.f32.mrf.mxu0
        %v1043 = vadd.f32 0.0, %v1042
        %v1044 = vpop.f32.mrf.mxu0
        %v1045 = vadd.f32 0.0, %v1044
        %1046 = vmatmul.bf16.gmra.mxu0 %v1007
        %v1047 = vpop.f32.mrf.mxu0
        %v1048 = vadd.f32 0.0, %v1047
        %v1049 = vpop.f32.mrf.mxu0
        %v1050 = vadd.f32 0.0, %v1049
        %1051 = vmatmul.bf16.gmra.mxu0 %v1010
        %v1052 = vpop.f32.mrf.mxu0
        %v1053 = vadd.f32 0.0, %v1052
        %v1054 = vpop.f32.mrf.mxu0
        %v1055 = vadd.f32 0.0, %v1054
        %1056 = vmatmul.bf16.gmra.mxu0 %v1013
        %v1057 = vpop.f32.mrf.mxu0
        %v1058 = vadd.f32 0.0, %v1057
        %v1059 = vpop.f32.mrf.mxu0
        %v1060 = vadd.f32 0.0, %v1059
        %1061 = vmatmul.bf16.gmra.mxu0 %v1016
        %v1062 = vpop.f32.mrf.mxu0
        %v1063 = vadd.f32 0.0, %v1062
        %v1064 = vpop.f32.mrf.mxu0
        %v1065 = vadd.f32 0.0, %v1064
        %1066 = vdwg.mxu0
        %v1067 = vpack.c.bf16 %v1028, %v1028
        %v1068 = vpack.c.bf16 %v1030, %v1030
        %v1069 = vpack.c.bf16 %v1033, %v1033
        %v1070 = vpack.c.bf16 %v1035, %v1035
        %v1071 = vpack.c.bf16 %v1038, %v1038
        %v1072 = vpack.c.bf16 %v1040, %v1040
        %v1073 = vpack.c.bf16 %v1043, %v1043
        %v1074 = vpack.c.bf16 %v1045, %v1045
        %v1075 = vpack.c.bf16 %v1048, %v1048
        %v1076 = vpack.c.bf16 %v1050, %v1050
        %v1077 = vpack.c.bf16 %v1053, %v1053
        %v1078 = vpack.c.bf16 %v1055, %v1055
        %v1079 = vpack.c.bf16 %v1058, %v1058
        %v1080 = vpack.c.bf16 %v1060, %v1060
        %v1081 = vpack.c.bf16 %v1063, %v1063
        %v1082 = vpack.c.bf16 %v1065, %v1065
        %1083 = vst [vmem:[%s494] sm:$0xf] %v1067
        %1084 = vst [vmem:[%s494 + $0x4] sm:$0xf] %v1068
        %1085 = vst [vmem:[%s494 + $0x8] sm:$0xf] %v1069
        %1086 = vst [vmem:[%s494 + $0xc] sm:$0xf] %v1070
        %1087 = vst [vmem:[%s494 + $0x10] sm:$0xf] %v1071
        %1088 = vst [vmem:[%s494 + $0x14] sm:$0xf] %v1072
        %1089 = vst [vmem:[%s494 + $0x18] sm:$0xf] %v1073
        %1090 = vst [vmem:[%s494 + $0x1c] sm:$0xf] %v1074
        %1091 = vst [vmem:[%s494 + $0x20] sm:$0xf] %v1075
        %1092 = vst [vmem:[%s494 + $0x24] sm:$0xf] %v1076
        %1093 = vst [vmem:[%s494 + $0x28] sm:$0xf] %v1077
        %1094 = vst [vmem:[%s494 + $0x2c] sm:$0xf] %v1078
        %1095 = vst [vmem:[%s494 + $0x30] sm:$0xf] %v1079
        %1096 = vst [vmem:[%s494 + $0x34] sm:$0xf] %v1080
        %1097 = vst [vmem:[%s494 + $0x38] sm:$0xf] %v1081
        %1098 = vst [vmem:[%s494 + $0x3c] sm:$0xf] %v1082
        %s1099 = smul.u32 16, %s15
        %p1100 = scmp.lt.s32.totalorder %s1099, 127
        %s1101 = scalar_select %p1100, %s1099, 127
        %s1102 = smul.addr %s1101, 4
        %s1103 = scalar_lea.vmem %s4, %s1102
        // Predicated region
        $region78: #{transition_forward.3} parent=72 // pred_check
          %p1104 = pneg %p122
        $region79: #{transition_forward.3} parent=72 // pred_check_branch
          %1106 = sbr.rel (%p1104) target = $region81
        $region80: #{transition_forward.3} parent=72 // pred_region
          %s1107 = smul.u32 16, %s15
        $region81: #{transition_forward.3} parent=72 // pred_fallthru
          _
      $region73: #{transition_forward.3} parent=5 // pred_fallthru
        _
      %p1108 = scmp.le.s32.totalorder 2, %s10
      // Predicated region
      $region82: #{transition_forward.3} parent=5 // pred_check
        %p1109 = pneg %p1108
      $region83: #{transition_forward.3} parent=5 // pred_check_branch
        %1111 = sbr.rel (%p1109) target = $region85
      $region84: #{transition_forward.3} parent=5 // pred_region
        %s1112 = ssub.s32 %s10, 2
        // Predicated region
        $region86: #{transition_forward.3} parent=84 // pred_check
          %p1113 = pneg %p128
        $region87: #{transition_forward.3} parent=84 // pred_check_branch
          %1115 = sbr.rel (%p1113) target = $region89
        $region88: #{transition_forward.3} parent=84 // pred_region
          %s1116 = smul.u32 16, %s16
          %p1117 = scmp.lt.s32.totalorder %s1116, 127
          %s1118 = scalar_select %p1117, %s1116, 127
          %s1119 = smul.addr %s1118, 4
          %s1120 = scalar_lea.vmem %s4, %s1119
        $region89: #{transition_forward.3} parent=84 // pred_fallthru
          _
      $region85: #{transition_forward.3} parent=5 // pred_fallthru
        _
    $region6: #{transition_forward.3} parent=1 // loop_footer
      %s14 = sadd.s32 1, %s10
    $region7: #{transition_forward.3} parent=1 // loop_footer_branch
      %9 = sbr.rel target = $region3
    $region8: #{transition_forward.3} parent=1 // loop_exit
      _

</llo_original>
